<compile_context>
chip_gen: v5e
topology: v5e:2x2
jax: 0.10.0
libtpu: 0.0.40
codegen_flags: <defaults>
</compile_context>

<pallas_src>
import jax
import jax.numpy as jnp
from jax.experimental import pallas as pl
from jax.experimental.pallas import tpu as pltpu


def fused_encoder_kernel(patches_ref, wc_ref, bc_ref, wfr_ref, bf_ref,
                         alpha_ref, out_ref):
    # patches_ref: (1, 27, P)   wc_ref: (16, 27)   bc_ref: (16, 1)
    # wfr_ref:     (16, P, O)   bf_ref: (1, O)     alpha_ref: SMEM (1, 1)
    # out_ref:     (1, 1, O)
    alpha = alpha_ref[0, 0]                                   # scalar from SMEM
    patches = patches_ref[0]                                  # [27, P]

    # Conv3d as a matmul: [16, 27] @ [27, P] -> [16, P]  (lane-dense, C-major)
    act = jnp.dot(wc_ref[...], patches,
                  preferred_element_type=jnp.float32)
    act = act + bc_ref[...]                                   # bias over lanes
    act = jnp.where(act > 0, act, alpha * act)                # PReLU

    # Linear: out[o] = bf[o] + sum_{c,p} act[c,p] * wf[o, c*P + p]
    # wfr[c, p, o] == wf[o, c*P + p]  (prepared in glue), so accumulate 16
    # small (1,P)x(P,O) matmuls -- no activation reshape/transpose required.
    C = wc_ref.shape[0]
    acc = bf_ref[...]                                         # [1, O]
    for c in range(C):
        acc = acc + jnp.dot(act[c:c + 1, :], wfr_ref[c],
                            preferred_element_type=jnp.float32)
    out_ref[0] = acc


def im2col_3d(x, k=3):
    # x: [B, D, H, W] -> [B, k*k*k, Do*Ho*Wo]  (kd-major, then kh, then kw)
    # P lands on the last (lane) axis so the patch tile is lane-dense.
    B, D, H, W = x.shape
    Do, Ho, Wo = D - k + 1, H - k + 1, W - k + 1
    P = Do * Ho * Wo
    cols = []
    for kd in range(k):
        for kh in range(k):
            for kw in range(k):
                cols.append(
                    x[:, kd:kd + Do, kh:kh + Ho, kw:kw + Wo].reshape(B, 1, P))
    return jnp.concatenate(cols, axis=1)                      # [B, 27, P]


def voxel_encoder4_forward(x, params):
    # x: [B, 1, D, H, W] float32 (NCDHW, as in PyTorch)
    wc = params["conv_w"]          # [16, 1, 3, 3, 3]
    bc = params["conv_b"]          # [16]
    alpha = params["prelu_a"]      # scalar (PReLU, num_parameters=1)
    wf = params["fc_w"]            # [O, F]   F = 16 * Do*Ho*Wo
    bf = params["fc_b"]            # [O]

    B = x.shape[0]
    C_out, k = wc.shape[0], wc.shape[2]
    D, H, W = x.shape[2], x.shape[3], x.shape[4]
    Do, Ho, Wo = D - k + 1, H - k + 1, W - k + 1
    P = Do * Ho * Wo
    KK = k * k * k
    O = wf.shape[0]

    patches = im2col_3d(x[:, 0], k)                           # [B, 27, P]
    wc_mat = wc.reshape(C_out, KK)                            # [16, 27]
    bc_col = bc.reshape(C_out, 1)                             # [16, 1]
    # wf[o, c*P + p] -> wfr[c, p, o]  (matches PyTorch channel-major flatten)
    wfr = wf.reshape(O, C_out, P).transpose(1, 2, 0)          # [16, P, O]
    bf_row = bf.reshape(1, O)
    alpha_s = jnp.reshape(alpha, (1, 1)).astype(jnp.float32)

    out = pl.pallas_call(
        fused_encoder_kernel,
        out_shape=jax.ShapeDtypeStruct((B, 1, O), jnp.float32),
        grid=(B,),
        in_specs=[
            pl.BlockSpec((1, KK, P), lambda b: (b, 0, 0)),        # patches
            pl.BlockSpec((C_out, KK), lambda b: (0, 0)),          # conv weight
            pl.BlockSpec((C_out, 1), lambda b: (0, 0)),           # conv bias
            pl.BlockSpec((C_out, P, O), lambda b: (0, 0, 0)),     # fc weight
            pl.BlockSpec((1, O), lambda b: (0, 0)),               # fc bias
            pl.BlockSpec(memory_space=pltpu.MemorySpace.SMEM),    # prelu alpha
        ],
        out_specs=pl.BlockSpec((1, 1, O), lambda b: (b, 0, 0)),
        compiler_params=pltpu.CompilerParams(
            dimension_semantics=("parallel",)),
    )(patches, wc_mat, bc_col, wfr, bf_row, alpha_s)
    return out.reshape(B, O)


def reference_forward(x, params):
    # Pure-JAX reference mirroring the PyTorch forward pass.
    wc, bc = params["conv_w"], params["conv_b"]
    alpha, wf, bf = params["prelu_a"], params["fc_w"], params["fc_b"]
    y = jax.lax.conv_general_dilated(
        x, wc, window_strides=(1, 1, 1), padding="VALID",
        dimension_numbers=("NCDHW", "OIDHW", "NCDHW"))
    y = y + bc.reshape(1, -1, 1, 1, 1)
    y = jnp.where(y > 0, y, alpha * y)
    y = y.reshape(y.shape[0], -1)
    return y @ wf.T + bf


def init_params(key, input_size, output_size):
    k, C_out = 3, 16
    Do = input_size - k + 1
    F = C_out * Do * Do * Do
    k1, k2, k3, k4 = jax.random.split(key, 4)
    return dict(
        conv_w=jax.random.normal(k1, (C_out, 1, k, k, k), jnp.float32) * 0.1,
        conv_b=jax.random.normal(k2, (C_out,), jnp.float32) * 0.1,
        prelu_a=jnp.array(0.25, jnp.float32),   # PReLU default init
        fc_w=jax.random.normal(k3, (output_size, F), jnp.float32) * 0.02,
        fc_b=jax.random.normal(k4, (output_size,), jnp.float32) * 0.02,
    )


if __name__ == "__main__":
    B, input_size, output_size = 2, 8, 32
    key = jax.random.PRNGKey(0)
    kx, kp = jax.random.split(key)
    x = jax.random.normal(kx, (B, 1, input_size, input_size, input_size),
                          jnp.float32)
    params = init_params(kp, input_size, output_size)

    fwd = jax.jit(voxel_encoder4_forward)
    out = jax.block_until_ready(fwd(x, params))
    ref = jax.block_until_ready(reference_forward(x, params))
    assert out.shape == (B, output_size)
    assert jnp.allclose(out, ref, atol=1e-3, rtol=1e-3), \
        float(jnp.max(jnp.abs(out - ref)))
    print("KERNEL_OK")
</pallas_src>

<mosaic_0001>
module attributes {stable_mosaic.version = 11 : i64} {
  func.func @fused_encoder_kernel(%arg0: i32, %arg1: memref<1x27x216xf32, #tpu.memory_space<vmem>>, %arg2: memref<16x27xf32, #tpu.memory_space<vmem>>, %arg3: memref<16x1xf32, #tpu.memory_space<vmem>>, %arg4: memref<16x216x32xf32, #tpu.memory_space<vmem>>, %arg5: memref<1x32xf32, #tpu.memory_space<vmem>>, %arg6: memref<1x1xf32, #tpu.memory_space<smem>>, %arg7: memref<1x1x32xf32, #tpu.memory_space<vmem>>) attributes {dimension_semantics = [#tpu.dimension_semantics<parallel>], iteration_bounds = array<i64: 2>, scalar_prefetch = 0 : i64, scratch_operands = 0 : i64, tpu.core_type = #tpu.core_type<tc>, window_params = [{transform_indices = @transform_0, window_bounds = array<i64: 1, 27, 216>}, {pipeline_mode = #tpu.pipeline_mode<synchronous>, transform_indices = @transform_1, window_bounds = array<i64: 16, 27>}, {pipeline_mode = #tpu.pipeline_mode<synchronous>, transform_indices = @transform_2, window_bounds = array<i64: 16, 1>}, {pipeline_mode = #tpu.pipeline_mode<synchronous>, transform_indices = @transform_3, window_bounds = array<i64: 16, 216, 32>}, {pipeline_mode = #tpu.pipeline_mode<synchronous>, transform_indices = @transform_4, window_bounds = array<i64: 1, 32>}, {transform_indices = @transform_5, window_bounds = array<i64: 1, 1>}, {transform_indices = @transform_6, window_bounds = array<i64: 1, 1, 32>}]} {
    %c0 = arith.constant 0 : index
    %c0_0 = arith.constant 0 : index
    %0 = memref.load %arg6[%c0, %c0_0] : memref<1x1xf32, #tpu.memory_space<smem>>
    %c0_1 = arith.constant 0 : index
    %c0_2 = arith.constant 0 : index
    %c0_3 = arith.constant 0 : index
    %1 = vector.load %arg1[%c0_1, %c0_2, %c0_3] : memref<1x27x216xf32, #tpu.memory_space<vmem>>, vector<1x27x216xf32>
    %2 = vector.shape_cast %1 : vector<1x27x216xf32> to vector<27x216xf32>
    %c0_4 = arith.constant 0 : index
    %c0_5 = arith.constant 0 : index
    %3 = vector.load %arg2[%c0_4, %c0_5] : memref<16x27xf32, #tpu.memory_space<vmem>>, vector<16x27xf32>
    %cst = arith.constant dense<0.000000e+00> : vector<16x216xf32>
    %4 = tpu.matmul %3, %2, %cst {dimension_numbers = #tpu.dot_dimension_numbers<[1], [0], [0], [1], [0, 0, 1, 1], [], []>} : vector<16x27xf32>, vector<27x216xf32>, vector<16x216xf32> -> vector<16x216xf32>
    %c0_6 = arith.constant 0 : index
    %c0_7 = arith.constant 0 : index
    %5 = vector.load %arg3[%c0_6, %c0_7] : memref<16x1xf32, #tpu.memory_space<vmem>>, vector<16x1xf32>
    %6 = vector.broadcast %5 : vector<16x1xf32> to vector<16x216xf32>
    %7 = arith.addf %4, %6 : vector<16x216xf32>
    %cst_8 = arith.constant 0.000000e+00 : f32
    %8 = vector.broadcast %cst_8 : f32 to vector<16x216xf32>
    %9 = arith.cmpf ogt, %7, %8 : vector<16x216xf32>
    %10 = vector.broadcast %0 : f32 to vector<16x216xf32>
    %11 = arith.mulf %10, %7 : vector<16x216xf32>
    %12 = arith.select %9, %7, %11 : vector<16x216xi1>, vector<16x216xf32>
    %c0_9 = arith.constant 0 : index
    %c0_10 = arith.constant 0 : index
    %13 = vector.load %arg5[%c0_9, %c0_10] : memref<1x32xf32, #tpu.memory_space<vmem>>, vector<1x32xf32>
    %14 = vector.extract_strided_slice %12 {offsets = [0, 0], sizes = [1, 216], strides = [1, 1]} : vector<16x216xf32> to vector<1x216xf32>
    %c0_11 = arith.constant 0 : index
    %c0_12 = arith.constant 0 : index
    %c0_13 = arith.constant 0 : index
    %15 = vector.load %arg4[%c0_11, %c0_12, %c0_13] : memref<16x216x32xf32, #tpu.memory_space<vmem>>, vector<1x216x32xf32>
    %16 = vector.shape_cast %15 : vector<1x216x32xf32> to vector<216x32xf32>
    %cst_14 = arith.constant dense<0.000000e+00> : vector<1x32xf32>
    %17 = tpu.matmul %14, %16, %cst_14 {dimension_numbers = #tpu.dot_dimension_numbers<[1], [0], [0], [1], [0, 0, 1, 1], [], []>} : vector<1x216xf32>, vector<216x32xf32>, vector<1x32xf32> -> vector<1x32xf32>
    %18 = arith.addf %13, %17 : vector<1x32xf32>
    %19 = vector.extract_strided_slice %12 {offsets = [1, 0], sizes = [1, 216], strides = [1, 1]} : vector<16x216xf32> to vector<1x216xf32>
    %c1 = arith.constant 1 : index
    %c0_15 = arith.constant 0 : index
    %c0_16 = arith.constant 0 : index
    %20 = vector.load %arg4[%c1, %c0_15, %c0_16] : memref<16x216x32xf32, #tpu.memory_space<vmem>>, vector<1x216x32xf32>
    %21 = vector.shape_cast %20 : vector<1x216x32xf32> to vector<216x32xf32>
    %cst_17 = arith.constant dense<0.000000e+00> : vector<1x32xf32>
    %22 = tpu.matmul %19, %21, %cst_17 {dimension_numbers = #tpu.dot_dimension_numbers<[1], [0], [0], [1], [0, 0, 1, 1], [], []>} : vector<1x216xf32>, vector<216x32xf32>, vector<1x32xf32> -> vector<1x32xf32>
    %23 = arith.addf %18, %22 : vector<1x32xf32>
    %24 = vector.extract_strided_slice %12 {offsets = [2, 0], sizes = [1, 216], strides = [1, 1]} : vector<16x216xf32> to vector<1x216xf32>
    %c2 = arith.constant 2 : index
    %c0_18 = arith.constant 0 : index
    %c0_19 = arith.constant 0 : index
    %25 = vector.load %arg4[%c2, %c0_18, %c0_19] : memref<16x216x32xf32, #tpu.memory_space<vmem>>, vector<1x216x32xf32>
    %26 = vector.shape_cast %25 : vector<1x216x32xf32> to vector<216x32xf32>
    %cst_20 = arith.constant dense<0.000000e+00> : vector<1x32xf32>
    %27 = tpu.matmul %24, %26, %cst_20 {dimension_numbers = #tpu.dot_dimension_numbers<[1], [0], [0], [1], [0, 0, 1, 1], [], []>} : vector<1x216xf32>, vector<216x32xf32>, vector<1x32xf32> -> vector<1x32xf32>
    %28 = arith.addf %23, %27 : vector<1x32xf32>
    %29 = vector.extract_strided_slice %12 {offsets = [3, 0], sizes = [1, 216], strides = [1, 1]} : vector<16x216xf32> to vector<1x216xf32>
    %c3 = arith.constant 3 : index
    %c0_21 = arith.constant 0 : index
    %c0_22 = arith.constant 0 : index
    %30 = vector.load %arg4[%c3, %c0_21, %c0_22] : memref<16x216x32xf32, #tpu.memory_space<vmem>>, vector<1x216x32xf32>
    %31 = vector.shape_cast %30 : vector<1x216x32xf32> to vector<216x32xf32>
    %cst_23 = arith.constant dense<0.000000e+00> : vector<1x32xf32>
    %32 = tpu.matmul %29, %31, %cst_23 {dimension_numbers = #tpu.dot_dimension_numbers<[1], [0], [0], [1], [0, 0, 1, 1], [], []>} : vector<1x216xf32>, vector<216x32xf32>, vector<1x32xf32> -> vector<1x32xf32>
    %33 = arith.addf %28, %32 : vector<1x32xf32>
    %34 = vector.extract_strided_slice %12 {offsets = [4, 0], sizes = [1, 216], strides = [1, 1]} : vector<16x216xf32> to vector<1x216xf32>
    %c4 = arith.constant 4 : index
    %c0_24 = arith.constant 0 : index
    %c0_25 = arith.constant 0 : index
    %35 = vector.load %arg4[%c4, %c0_24, %c0_25] : memref<16x216x32xf32, #tpu.memory_space<vmem>>, vector<1x216x32xf32>
    %36 = vector.shape_cast %35 : vector<1x216x32xf32> to vector<216x32xf32>
    %cst_26 = arith.constant dense<0.000000e+00> : vector<1x32xf32>
    %37 = tpu.matmul %34, %36, %cst_26 {dimension_numbers = #tpu.dot_dimension_numbers<[1], [0], [0], [1], [0, 0, 1, 1], [], []>} : vector<1x216xf32>, vector<216x32xf32>, vector<1x32xf32> -> vector<1x32xf32>
    %38 = arith.addf %33, %37 : vector<1x32xf32>
    %39 = vector.extract_strided_slice %12 {offsets = [5, 0], sizes = [1, 216], strides = [1, 1]} : vector<16x216xf32> to vector<1x216xf32>
    %c5 = arith.constant 5 : index
    %c0_27 = arith.constant 0 : index
    %c0_28 = arith.constant 0 : index
    %40 = vector.load %arg4[%c5, %c0_27, %c0_28] : memref<16x216x32xf32, #tpu.memory_space<vmem>>, vector<1x216x32xf32>
    %41 = vector.shape_cast %40 : vector<1x216x32xf32> to vector<216x32xf32>
    %cst_29 = arith.constant dense<0.000000e+00> : vector<1x32xf32>
    %42 = tpu.matmul %39, %41, %cst_29 {dimension_numbers = #tpu.dot_dimension_numbers<[1], [0], [0], [1], [0, 0, 1, 1], [], []>} : vector<1x216xf32>, vector<216x32xf32>, vector<1x32xf32> -> vector<1x32xf32>
    %43 = arith.addf %38, %42 : vector<1x32xf32>
    %44 = vector.extract_strided_slice %12 {offsets = [6, 0], sizes = [1, 216], strides = [1, 1]} : vector<16x216xf32> to vector<1x216xf32>
    %c6 = arith.constant 6 : index
    %c0_30 = arith.constant 0 : index
    %c0_31 = arith.constant 0 : index
    %45 = vector.load %arg4[%c6, %c0_30, %c0_31] : memref<16x216x32xf32, #tpu.memory_space<vmem>>, vector<1x216x32xf32>
    %46 = vector.shape_cast %45 : vector<1x216x32xf32> to vector<216x32xf32>
    %cst_32 = arith.constant dense<0.000000e+00> : vector<1x32xf32>
    %47 = tpu.matmul %44, %46, %cst_32 {dimension_numbers = #tpu.dot_dimension_numbers<[1], [0], [0], [1], [0, 0, 1, 1], [], []>} : vector<1x216xf32>, vector<216x32xf32>, vector<1x32xf32> -> vector<1x32xf32>
    %48 = arith.addf %43, %47 : vector<1x32xf32>
    %49 = vector.extract_strided_slice %12 {offsets = [7, 0], sizes = [1, 216], strides = [1, 1]} : vector<16x216xf32> to vector<1x216xf32>
    %c7 = arith.constant 7 : index
    %c0_33 = arith.constant 0 : index
    %c0_34 = arith.constant 0 : index
    %50 = vector.load %arg4[%c7, %c0_33, %c0_34] : memref<16x216x32xf32, #tpu.memory_space<vmem>>, vector<1x216x32xf32>
    %51 = vector.shape_cast %50 : vector<1x216x32xf32> to vector<216x32xf32>
    %cst_35 = arith.constant dense<0.000000e+00> : vector<1x32xf32>
    %52 = tpu.matmul %49, %51, %cst_35 {dimension_numbers = #tpu.dot_dimension_numbers<[1], [0], [0], [1], [0, 0, 1, 1], [], []>} : vector<1x216xf32>, vector<216x32xf32>, vector<1x32xf32> -> vector<1x32xf32>
    %53 = arith.addf %48, %52 : vector<1x32xf32>
    %54 = vector.extract_strided_slice %12 {offsets = [8, 0], sizes = [1, 216], strides = [1, 1]} : vector<16x216xf32> to vector<1x216xf32>
    %c8 = arith.constant 8 : index
    %c0_36 = arith.constant 0 : index
    %c0_37 = arith.constant 0 : index
    %55 = vector.load %arg4[%c8, %c0_36, %c0_37] : memref<16x216x32xf32, #tpu.memory_space<vmem>>, vector<1x216x32xf32>
    %56 = vector.shape_cast %55 : vector<1x216x32xf32> to vector<216x32xf32>
    %cst_38 = arith.constant dense<0.000000e+00> : vector<1x32xf32>
    %57 = tpu.matmul %54, %56, %cst_38 {dimension_numbers = #tpu.dot_dimension_numbers<[1], [0], [0], [1], [0, 0, 1, 1], [], []>} : vector<1x216xf32>, vector<216x32xf32>, vector<1x32xf32> -> vector<1x32xf32>
    %58 = arith.addf %53, %57 : vector<1x32xf32>
    %59 = vector.extract_strided_slice %12 {offsets = [9, 0], sizes = [1, 216], strides = [1, 1]} : vector<16x216xf32> to vector<1x216xf32>
    %c9 = arith.constant 9 : index
    %c0_39 = arith.constant 0 : index
    %c0_40 = arith.constant 0 : index
    %60 = vector.load %arg4[%c9, %c0_39, %c0_40] : memref<16x216x32xf32, #tpu.memory_space<vmem>>, vector<1x216x32xf32>
    %61 = vector.shape_cast %60 : vector<1x216x32xf32> to vector<216x32xf32>
    %cst_41 = arith.constant dense<0.000000e+00> : vector<1x32xf32>
    %62 = tpu.matmul %59, %61, %cst_41 {dimension_numbers = #tpu.dot_dimension_numbers<[1], [0], [0], [1], [0, 0, 1, 1], [], []>} : vector<1x216xf32>, vector<216x32xf32>, vector<1x32xf32> -> vector<1x32xf32>
    %63 = arith.addf %58, %62 : vector<1x32xf32>
    %64 = vector.extract_strided_slice %12 {offsets = [10, 0], sizes = [1, 216], strides = [1, 1]} : vector<16x216xf32> to vector<1x216xf32>
    %c10 = arith.constant 10 : index
    %c0_42 = arith.constant 0 : index
    %c0_43 = arith.constant 0 : index
    %65 = vector.load %arg4[%c10, %c0_42, %c0_43] : memref<16x216x32xf32, #tpu.memory_space<vmem>>, vector<1x216x32xf32>
    %66 = vector.shape_cast %65 : vector<1x216x32xf32> to vector<216x32xf32>
    %cst_44 = arith.constant dense<0.000000e+00> : vector<1x32xf32>
    %67 = tpu.matmul %64, %66, %cst_44 {dimension_numbers = #tpu.dot_dimension_numbers<[1], [0], [0], [1], [0, 0, 1, 1], [], []>} : vector<1x216xf32>, vector<216x32xf32>, vector<1x32xf32> -> vector<1x32xf32>
    %68 = arith.addf %63, %67 : vector<1x32xf32>
    %69 = vector.extract_strided_slice %12 {offsets = [11, 0], sizes = [1, 216], strides = [1, 1]} : vector<16x216xf32> to vector<1x216xf32>
    %c11 = arith.constant 11 : index
    %c0_45 = arith.constant 0 : index
    %c0_46 = arith.constant 0 : index
    %70 = vector.load %arg4[%c11, %c0_45, %c0_46] : memref<16x216x32xf32, #tpu.memory_space<vmem>>, vector<1x216x32xf32>
    %71 = vector.shape_cast %70 : vector<1x216x32xf32> to vector<216x32xf32>
    %cst_47 = arith.constant dense<0.000000e+00> : vector<1x32xf32>
    %72 = tpu.matmul %69, %71, %cst_47 {dimension_numbers = #tpu.dot_dimension_numbers<[1], [0], [0], [1], [0, 0, 1, 1], [], []>} : vector<1x216xf32>, vector<216x32xf32>, vector<1x32xf32> -> vector<1x32xf32>
    %73 = arith.addf %68, %72 : vector<1x32xf32>
    %74 = vector.extract_strided_slice %12 {offsets = [12, 0], sizes = [1, 216], strides = [1, 1]} : vector<16x216xf32> to vector<1x216xf32>
    %c12 = arith.constant 12 : index
    %c0_48 = arith.constant 0 : index
    %c0_49 = arith.constant 0 : index
    %75 = vector.load %arg4[%c12, %c0_48, %c0_49] : memref<16x216x32xf32, #tpu.memory_space<vmem>>, vector<1x216x32xf32>
    %76 = vector.shape_cast %75 : vector<1x216x32xf32> to vector<216x32xf32>
    %cst_50 = arith.constant dense<0.000000e+00> : vector<1x32xf32>
    %77 = tpu.matmul %74, %76, %cst_50 {dimension_numbers = #tpu.dot_dimension_numbers<[1], [0], [0], [1], [0, 0, 1, 1], [], []>} : vector<1x216xf32>, vector<216x32xf32>, vector<1x32xf32> -> vector<1x32xf32>
    %78 = arith.addf %73, %77 : vector<1x32xf32>
    %79 = vector.extract_strided_slice %12 {offsets = [13, 0], sizes = [1, 216], strides = [1, 1]} : vector<16x216xf32> to vector<1x216xf32>
    %c13 = arith.constant 13 : index
    %c0_51 = arith.constant 0 : index
    %c0_52 = arith.constant 0 : index
    %80 = vector.load %arg4[%c13, %c0_51, %c0_52] : memref<16x216x32xf32, #tpu.memory_space<vmem>>, vector<1x216x32xf32>
    %81 = vector.shape_cast %80 : vector<1x216x32xf32> to vector<216x32xf32>
    %cst_53 = arith.constant dense<0.000000e+00> : vector<1x32xf32>
    %82 = tpu.matmul %79, %81, %cst_53 {dimension_numbers = #tpu.dot_dimension_numbers<[1], [0], [0], [1], [0, 0, 1, 1], [], []>} : vector<1x216xf32>, vector<216x32xf32>, vector<1x32xf32> -> vector<1x32xf32>
    %83 = arith.addf %78, %82 : vector<1x32xf32>
    %84 = vector.extract_strided_slice %12 {offsets = [14, 0], sizes = [1, 216], strides = [1, 1]} : vector<16x216xf32> to vector<1x216xf32>
    %c14 = arith.constant 14 : index
    %c0_54 = arith.constant 0 : index
    %c0_55 = arith.constant 0 : index
    %85 = vector.load %arg4[%c14, %c0_54, %c0_55] : memref<16x216x32xf32, #tpu.memory_space<vmem>>, vector<1x216x32xf32>
    %86 = vector.shape_cast %85 : vector<1x216x32xf32> to vector<216x32xf32>
    %cst_56 = arith.constant dense<0.000000e+00> : vector<1x32xf32>
    %87 = tpu.matmul %84, %86, %cst_56 {dimension_numbers = #tpu.dot_dimension_numbers<[1], [0], [0], [1], [0, 0, 1, 1], [], []>} : vector<1x216xf32>, vector<216x32xf32>, vector<1x32xf32> -> vector<1x32xf32>
    %88 = arith.addf %83, %87 : vector<1x32xf32>
    %89 = vector.extract_strided_slice %12 {offsets = [15, 0], sizes = [1, 216], strides = [1, 1]} : vector<16x216xf32> to vector<1x216xf32>
    %c15 = arith.constant 15 : index
    %c0_57 = arith.constant 0 : index
    %c0_58 = arith.constant 0 : index
    %90 = vector.load %arg4[%c15, %c0_57, %c0_58] : memref<16x216x32xf32, #tpu.memory_space<vmem>>, vector<1x216x32xf32>
    %91 = vector.shape_cast %90 : vector<1x216x32xf32> to vector<216x32xf32>
    %cst_59 = arith.constant dense<0.000000e+00> : vector<1x32xf32>
    %92 = tpu.matmul %89, %91, %cst_59 {dimension_numbers = #tpu.dot_dimension_numbers<[1], [0], [0], [1], [0, 0, 1, 1], [], []>} : vector<1x216xf32>, vector<216x32xf32>, vector<1x32xf32> -> vector<1x32xf32>
    %93 = arith.addf %88, %92 : vector<1x32xf32>
    %c0_60 = arith.constant 0 : index
    %c0_61 = arith.constant 0 : index
    %c0_62 = arith.constant 0 : index
    %94 = vector.load %arg7[%c0_60, %c0_61, %c0_62] : memref<1x1x32xf32, #tpu.memory_space<vmem>>, vector<1x1x32xf32>
    %95 = vector.shape_cast %94 : vector<1x1x32xf32> to vector<1x32xf32>
    %96 = vector.shape_cast %93 : vector<1x32xf32> to vector<1x1x32xf32>
    tpu.vector_store %arg7[%c0_60, %c0_61, %c0_62], %96 {strides = array<i32>} : memref<1x1x32xf32, #tpu.memory_space<vmem>>, vector<1x1x32xf32>,
    return
  }
  func.func @transform_0(%arg0: i32) -> (i32, i32, i32) {
    %c0_i32 = arith.constant 0 : i32
    %c0_i32_0 = arith.constant 0 : i32
    %c0_i32_1 = arith.constant 0 : i32
    return %arg0, %c0_i32, %c0_i32_0 : i32, i32, i32
  }
  func.func @transform_1(%arg0: i32) -> (i32, i32) {
    %c0_i32 = arith.constant 0 : i32
    %c0_i32_0 = arith.constant 0 : i32
    %c0_i32_1 = arith.constant 0 : i32
    return %c0_i32, %c0_i32_0 : i32, i32
  }
  func.func @transform_2(%arg0: i32) -> (i32, i32) {
    %c0_i32 = arith.constant 0 : i32
    %c0_i32_0 = arith.constant 0 : i32
    %c0_i32_1 = arith.constant 0 : i32
    return %c0_i32, %c0_i32_0 : i32, i32
  }
  func.func @transform_3(%arg0: i32) -> (i32, i32, i32) {
    %c0_i32 = arith.constant 0 : i32
    %c0_i32_0 = arith.constant 0 : i32
    %c0_i32_1 = arith.constant 0 : i32
    %c0_i32_2 = arith.constant 0 : i32
    return %c0_i32, %c0_i32_0, %c0_i32_1 : i32, i32, i32
  }
  func.func @transform_4(%arg0: i32) -> (i32, i32) {
    %c0_i32 = arith.constant 0 : i32
    %c0_i32_0 = arith.constant 0 : i32
    %c0_i32_1 = arith.constant 0 : i32
    return %c0_i32, %c0_i32_0 : i32, i32
  }
  func.func @transform_5(%arg0: i32) -> (i32, i32) {
    %c0_i32 = arith.constant 0 : i32
    %c0_i32_0 = arith.constant 0 : i32
    %c0_i32_1 = arith.constant 0 : i32
    return %c0_i32, %c0_i32_0 : i32, i32
  }
  func.func @transform_6(%arg0: i32) -> (i32, i32, i32) {
    %c0_i32 = arith.constant 0 : i32
    %c0_i32_0 = arith.constant 0 : i32
    %c0_i32_1 = arith.constant 0 : i32
    return %arg0, %c0_i32, %c0_i32_0 : i32, i32, i32
  }
}

</mosaic_0001>

<llo_original>
// kernel: voxel_encoder4_forward.1
$region0: #{voxel_encoder4_forward.1}
  #allocation0 [shape = 'u32[]', space=smem, size = 0x4, offset = 0x4, fixed_abs, tag = 'smem constant byte address 0x4 - core index']
  #allocation1 [shape = 'u32[72,128]{1,0:T(1,128)}', space=vmem, size = 0x9000, scoped, tag = 'internal scratch']
  #allocation2 [shape = 'f32[1,1]{1,0:T(1,128)S(6)}', space=smem, size = 0x200, scoped, tag = 'scoped memory for voxel_encoder4_forward.1']
  %s0 = inlined_call_operand.vmem [shape: f32[2,27,216], index: 0, kind: input, shape index: {}]
  %s1 = inlined_call_operand.vmem [shape: f32[16,27], index: 1, kind: input, shape index: {}]
  %s2 = inlined_call_operand.vmem [shape: f32[16,1], index: 2, kind: input, shape index: {}]
  %s3 = inlined_call_operand.vmem [shape: f32[16,216,32], index: 3, kind: input, shape index: {}]
  %s4 = inlined_call_operand.vmem [shape: f32[1,32], index: 4, kind: input, shape index: {}]
  %s5 = inlined_call_operand.<no memory space> [shape: f32[1,1], index: 5, kind: input, shape index: {}]
  %s6 = inlined_call_operand.hbm [shape: f32[2,1,32], index: 6, kind: output, shape index: {}]
  %s7 = sld [smem:[#allocation0]]
  $region57: #{voxel_encoder4_forward.1} parent=0
    _
  %s9 = ssub.s32 1, %s7
  %s10 = scalar_select 0, %s9, %s7
  %11 = sst [smem:[#allocation2]] %s5
  $region1: #{voxel_encoder4_forward.1} parent=0
    #allocation3 [shape = 'u8[1024]{0}', space=vmem, size = 0x400, scoped, tag = 'output window, operand 0']
    #allocation4 [shape = 's32[2]{0}', space=sflag, size = 0x8, scoped, tag = 'scoped memory for voxel_encoder4_forward.1']
    %12 = vsyncpa [#allocation4], 0
    %s13 = scalar_lea.sflag [#allocation4], 1
    %14 = vsyncpa %s13, 0
    loop: start=0, step=1, limit=4
    $region2: #{voxel_encoder4_forward.1} parent=1 // loop_pre_header
      _
    $region3: #{voxel_encoder4_forward.1} parent=1 // loop_header
      %s16 = sphi 0, %s20
      %p17 = scmp.ge.s32.totalorder %s16, 4
      %s26 = sphi 0, %s28
      %s29 = sphi 0, %s26
      %s30 = sphi 0, %s29
      %s46 = sphi 0, %s30
      %s50 = sphi 0, %s50
      %s52 = sphi 0, %s50
      %s53 = sphi 0, %s52
      %s67 = sphi 0, %s53
      %s71 = sphi 0, %s71
      %s73 = sphi 0, %s71
      %s74 = sphi 0, %s73
      %s88 = sphi 0, %s74
      %s92 = sphi 0, %s92
      %s94 = sphi 0, %s92
      %s95 = sphi 0, %s94
      %s109 = sphi 0, %s95
      %s113 = sphi 0, %s113
      %s115 = sphi 0, %s113
      %s116 = sphi 0, %s115
      %s130 = sphi 0, %s116
      %s134 = sphi 0, %s134
      %s136 = sphi 0, %s134
      %s137 = sphi 0, %s136
      %s151 = sphi 0, %s137
      %s157 = sphi 0, %s159
      %s160 = sphi 0, %s157
      %s161 = sphi 0, %s160
      %s177 = sphi 0, %s161
    $region4: #{voxel_encoder4_forward.1} parent=1 // loop_header_branch
      %19 = sbr.rel (%p17) target = $region8
    $region5: #{voxel_encoder4_forward.1} parent=1 // loop_body
      %s21 = ssub.s32 %s16, 1
      %s22 = ssub.s32 %s16, 2
      %s23 = sadd.s32 %s16, 1
      %s24 = ssub.s32 %s16, %s23
      %p25 = scmp.eq.s32.totalorder %s24, 0
      %s27 = sadd.s32 %s26, 1
      %s28 = scalar_select %p25, %s26, %s27
      %p31 = pneg %p25
      %p32 = scmp.eq.s32.totalorder %s16, 1
      %p33 = por %p31, %p32
      %p34 = scmp.ne.s32.totalorder %s26, %s29
      %p35 = scmp.eq.s32.totalorder %s16, 0
      %p36 = por %p34, %p35
      %p37 = scmp.ne.s32.totalorder %s26, %s29
      %p38 = scmp.eq.s32.totalorder %s21, 1
      %p39 = por %p37, %p38
      %p40 = scmp.ne.s32.totalorder %s29, %s30
      %p41 = scmp.eq.s32.totalorder %s21, 0
      %p42 = por %p40, %p41
      %p43 = scmp.ne.s32.totalorder %s29, %s30
      %p44 = scmp.eq.s32.totalorder %s22, 1
      %p45 = por %p43, %p44
      %p47 = scmp.ne.s32.totalorder %s30, %s46
      %p48 = scmp.eq.s32.totalorder %s22, 0
      %p49 = por %p47, %p48
      %s51 = sadd.s32 %s50, 1
      %p54 = scmp.eq.s32.totalorder %s16, 1
      %p55 = scmp.ne.s32.totalorder %s50, %s52
      %p56 = scmp.eq.s32.totalorder %s16, 0
      %p57 = por %p55, %p56
      %p58 = scmp.ne.s32.totalorder %s50, %s52
      %p59 = scmp.eq.s32.totalorder %s21, 1
      %p60 = por %p58, %p59
      %p61 = scmp.ne.s32.totalorder %s52, %s53
      %p62 = scmp.eq.s32.totalorder %s21, 0
      %p63 = por %p61, %p62
      %p64 = scmp.ne.s32.totalorder %s52, %s53
      %p65 = scmp.eq.s32.totalorder %s22, 1
      %p66 = por %p64, %p65
      %p68 = scmp.ne.s32.totalorder %s53, %s67
      %p69 = scmp.eq.s32.totalorder %s22, 0
      %p70 = por %p68, %p69
      %s72 = sadd.s32 %s71, 1
      %p75 = scmp.eq.s32.totalorder %s16, 1
      %p76 = scmp.ne.s32.totalorder %s71, %s73
      %p77 = scmp.eq.s32.totalorder %s16, 0
      %p78 = por %p76, %p77
      %p79 = scmp.ne.s32.totalorder %s71, %s73
      %p80 = scmp.eq.s32.totalorder %s21, 1
      %p81 = por %p79, %p80
      %p82 = scmp.ne.s32.totalorder %s73, %s74
      %p83 = scmp.eq.s32.totalorder %s21, 0
      %p84 = por %p82, %p83
      %p85 = scmp.ne.s32.totalorder %s73, %s74
      %p86 = scmp.eq.s32.totalorder %s22, 1
      %p87 = por %p85, %p86
      %p89 = scmp.ne.s32.totalorder %s74, %s88
      %p90 = scmp.eq.s32.totalorder %s22, 0
      %p91 = por %p89, %p90
      %s93 = sadd.s32 %s92, 1
      %p96 = scmp.eq.s32.totalorder %s16, 1
      %p97 = scmp.ne.s32.totalorder %s92, %s94
      %p98 = scmp.eq.s32.totalorder %s16, 0
      %p99 = por %p97, %p98
      %p100 = scmp.ne.s32.totalorder %s92, %s94
      %p101 = scmp.eq.s32.totalorder %s21, 1
      %p102 = por %p100, %p101
      %p103 = scmp.ne.s32.totalorder %s94, %s95
      %p104 = scmp.eq.s32.totalorder %s21, 0
      %p105 = por %p103, %p104
      %p106 = scmp.ne.s32.totalorder %s94, %s95
      %p107 = scmp.eq.s32.totalorder %s22, 1
      %p108 = por %p106, %p107
      %p110 = scmp.ne.s32.totalorder %s95, %s109
      %p111 = scmp.eq.s32.totalorder %s22, 0
      %p112 = por %p110, %p111
      %s114 = sadd.s32 %s113, 1
      %p117 = scmp.eq.s32.totalorder %s16, 1
      %p118 = scmp.ne.s32.totalorder %s113, %s115
      %p119 = scmp.eq.s32.totalorder %s16, 0
      %p120 = por %p118, %p119
      %p121 = scmp.ne.s32.totalorder %s113, %s115
      %p122 = scmp.eq.s32.totalorder %s21, 1
      %p123 = por %p121, %p122
      %p124 = scmp.ne.s32.totalorder %s115, %s116
      %p125 = scmp.eq.s32.totalorder %s21, 0
      %p126 = por %p124, %p125
      %p127 = scmp.ne.s32.totalorder %s115, %s116
      %p128 = scmp.eq.s32.totalorder %s22, 1
      %p129 = por %p127, %p128
      %p131 = scmp.ne.s32.totalorder %s116, %s130
      %p132 = scmp.eq.s32.totalorder %s22, 0
      %p133 = por %p131, %p132
      %s135 = sadd.s32 %s134, 1
      %p138 = scmp.eq.s32.totalorder %s16, 1
      %p139 = scmp.ne.s32.totalorder %s134, %s136
      %p140 = scmp.eq.s32.totalorder %s16, 0
      %p141 = por %p139, %p140
      %p142 = scmp.ne.s32.totalorder %s134, %s136
      %p143 = scmp.eq.s32.totalorder %s21, 1
      %p144 = por %p142, %p143
      %p145 = scmp.ne.s32.totalorder %s136, %s137
      %p146 = scmp.eq.s32.totalorder %s21, 0
      %p147 = por %p145, %p146
      %p148 = scmp.ne.s32.totalorder %s136, %s137
      %p149 = scmp.eq.s32.totalorder %s22, 1
      %p150 = por %p148, %p149
      %p152 = scmp.ne.s32.totalorder %s137, %s151
      %p153 = scmp.eq.s32.totalorder %s22, 0
      %p154 = por %p152, %p153
      %s155 = ssub.s32 %s16, %s23
      %p156 = scmp.eq.s32.totalorder %s155, 0
      %s158 = sadd.s32 %s157, 1
      %s159 = scalar_select %p156, %s157, %s158
      %p162 = pneg %p156
      %p163 = scmp.eq.s32.totalorder %s16, 1
      %p164 = por %p162, %p163
      %p165 = scmp.ne.s32.totalorder %s157, %s160
      %p166 = scmp.eq.s32.totalorder %s16, 0
      %p167 = por %p165, %p166
      %p168 = scmp.ne.s32.totalorder %s157, %s160
      %p169 = scmp.eq.s32.totalorder %s21, 1
      %p170 = por %p168, %p169
      %p171 = scmp.ne.s32.totalorder %s160, %s161
      %p172 = scmp.eq.s32.totalorder %s21, 0
      %p173 = por %p171, %p172
      %p174 = scmp.ne.s32.totalorder %s160, %s161
      %p175 = scmp.eq.s32.totalorder %s22, 1
      %p176 = por %p174, %p175
      %p178 = scmp.ne.s32.totalorder %s161, %s177
      %p179 = scmp.eq.s32.totalorder %s22, 0
      %p180 = por %p178, %p179
      %p181 = scmp.le.s32.totalorder 1, %s16
      %p182 = scmp.lt.s32.totalorder %s16, 3
      %p183 = pnand %p181, %p182
      %p184 = pneg %p183
      // Predicated region
      $region9: #{voxel_encoder4_forward.1} parent=5 // pred_check
        _
      $region10: #{voxel_encoder4_forward.1} parent=5 // pred_check_branch
        %186 = sbr.rel (%p183) target = $region12
      $region11: #{voxel_encoder4_forward.1} parent=5 // pred_region
        %s187 = ssub.s32 %s16, 1
        // Predicated region
        $region13: #{voxel_encoder4_forward.1} parent=11 // pred_check
          %p188 = pneg %p63
        $region14: #{voxel_encoder4_forward.1} parent=11 // pred_check_branch
          %190 = sbr.rel (%p188) target = $region16
        $region15: #{voxel_encoder4_forward.1} parent=11 // pred_region
          _
        $region16: #{voxel_encoder4_forward.1} parent=11 // pred_fallthru
          _
        // Predicated region
        $region17: #{voxel_encoder4_forward.1} parent=11 // pred_check
          %p191 = pneg %p84
        $region18: #{voxel_encoder4_forward.1} parent=11 // pred_check_branch
          %193 = sbr.rel (%p191) target = $region20
        $region19: #{voxel_encoder4_forward.1} parent=11 // pred_region
          _
        $region20: #{voxel_encoder4_forward.1} parent=11 // pred_fallthru
          _
        // Predicated region
        $region21: #{voxel_encoder4_forward.1} parent=11 // pred_check
          %p194 = pneg %p105
        $region22: #{voxel_encoder4_forward.1} parent=11 // pred_check_branch
          %196 = sbr.rel (%p194) target = $region24
        $region23: #{voxel_encoder4_forward.1} parent=11 // pred_region
          _
        $region24: #{voxel_encoder4_forward.1} parent=11 // pred_fallthru
          _
        // Predicated region
        $region25: #{voxel_encoder4_forward.1} parent=11 // pred_check
          %p197 = pneg %p126
        $region26: #{voxel_encoder4_forward.1} parent=11 // pred_check_branch
          %199 = sbr.rel (%p197) target = $region28
        $region27: #{voxel_encoder4_forward.1} parent=11 // pred_region
          _
        $region28: #{voxel_encoder4_forward.1} parent=11 // pred_fallthru
          _
        // Predicated region
        $region29: #{voxel_encoder4_forward.1} parent=11 // pred_check
          %p200 = pneg %p147
        $region30: #{voxel_encoder4_forward.1} parent=11 // pred_check_branch
          %202 = sbr.rel (%p200) target = $region32
        $region31: #{voxel_encoder4_forward.1} parent=11 // pred_region
          _
        $region32: #{voxel_encoder4_forward.1} parent=11 // pred_fallthru
          _
      $region12: #{voxel_encoder4_forward.1} parent=5 // pred_fallthru
        _
      %p203 = scmp.lt.s32.totalorder %s16, 2
      // Predicated region
      $region33: #{voxel_encoder4_forward.1} parent=5 // pred_check
        %p204 = pneg %p203
      $region34: #{voxel_encoder4_forward.1} parent=5 // pred_check_branch
        %206 = sbr.rel (%p204) target = $region36
      $region35: #{voxel_encoder4_forward.1} parent=5 // pred_region
        // Predicated region
        $region37: #{voxel_encoder4_forward.1} parent=35 // pred_check
          %p207 = pneg %p36
        $region38: #{voxel_encoder4_forward.1} parent=35 // pred_check_branch
          %209 = sbr.rel (%p207) target = $region40
        $region39: #{voxel_encoder4_forward.1} parent=35 // pred_region
          %p210 = scmp.lt.s32.totalorder %s16, 1
          %s211 = scalar_select %p210, %s16, 1
          %s212 = smul.addr %s211, 8
          %s213 = smul.addr %s212, 8
          %s214 = scalar_lea.vmem %s0, %s213
        $region40: #{voxel_encoder4_forward.1} parent=35 // pred_fallthru
          _
      $region36: #{voxel_encoder4_forward.1} parent=5 // pred_fallthru
        _
      %p215 = scmp.le.s32.totalorder 1, %s16
      %p216 = scmp.lt.s32.totalorder %s16, 3
      %p217 = pnand %p215, %p216
      %p218 = pneg %p217
      // Predicated region
      $region41: #{voxel_encoder4_forward.1} parent=5 // pred_check
        _
      $region42: #{voxel_encoder4_forward.1} parent=5 // pred_check_branch
        %220 = sbr.rel (%p217) target = $region44
      $region43: #{voxel_encoder4_forward.1} parent=5 // pred_region
        %s221 = ssub.s32 %s16, 1
        %p222 = scmp.lt.s32.totalorder %s21, 1
        %s223 = scalar_select %p222, %s21, 1
        %s224 = smul.addr %s223, 8
        %s225 = smul.addr %s224, 8
        %s226 = scalar_lea.vmem %s0, %s225
        %p227 = pneg %p42
        %p228 = pneg %p39
        %p229 = pneg %p63
        %p230 = pneg %p60
        %p231 = pneg %p84
        %p232 = pneg %p81
        %p233 = pneg %p105
        %p234 = pneg %p102
        %p235 = pneg %p126
        %p236 = pneg %p123
        %p237 = pneg %p147
        %p238 = pneg %p144
        %p239 = pneg %p173
        %p240 = pneg %p170
        %s241 = sand.u32 %s160, 1
        %s242 = scalar_lea.sflag [#allocation4], %s241
        %s243 = sand.u32 %s160, 1
        %s244 = scalar_lea.vmem [#allocation3], %s243
        %p245 = scmp.lt.s32.totalorder %s21, 1
        %s246 = scalar_select %p245, %s21, 1
        %s247 = smul.addr %s246, 8
        %s248 = smul.addr %s247, 8
        %s249 = scalar_lea.vmem %s0, %s248
        %s250 = sld [smem:[#allocation2]]
        %v251 = vld [vmem:[%s249] sm:$0xff]
        %v252 = vld [vmem:[%s249 + $0x8] sm:$0xff]
        %v253 = vld [vmem:[%s249 + $0x10] sm:$0xff]
        %v254 = vld [vmem:[%s249 + $0x18] sm:$0xff]
        %v255 = vld [vmem:[%s249 + $0x20] sm:$0xff]
        %v256 = vld [vmem:[%s249 + $0x28] sm:$0xff]
        %v257 = vld [vmem:[%s249 + $0x30] sm:$0x7]
        %v258 = vld [vmem:[%s249 + $0x38] sm:$0x7]
        %v259 = vld [vmem:[%s1] sm:$0xff]
        %v260 = vld [vmem:[%s1 + $0x8] sm:$0xff]
        %v261 = vld [vmem:[%s2] sm:$0xff]
        %v262 = vld [vmem:[%s2 + $0x8] sm:$0xff]
        %264 = vset.pattern.permute.xlu0 0
        %265 = vperm.xlu0 %264, %v261
        %v266 = vpop.permute.xlu0 %265
        %269 = vset.pattern.permute.xlu0 0
        %270 = vperm.xlu0 %269, %v262
        %v271 = vpop.permute.xlu0 %270
        %vm273 = vcmask 220160
        %v275 = vsel %vm273, %v259, 0
        %v278 = vsel %vm273, %v260, 0
        %vm280 = vcmask 1042432
        %v282 = vsel %vm280, %v257, 0
        %v285 = vsel %vm280, %v258, 0
        %287 = vmatpush.msra.mxu0 0.0
        %288 = vmatpush.msra.mxu0 0.0
        %289 = vmatpush.msra.mxu0 0.0
        %290 = vmatpush.msra.mxu0 0.0
        %291 = vmatpush.msra.mxu0 0.0
        %292 = vmatpush.msra.mxu0 0.0
        %293 = vmatpush.msra.mxu0 0.0
        %294 = vmatpush.msra.mxu0 0.0
        %295 = vmatpush.msra.mxu0 0.0
        %296 = vmatpush.msra.mxu0 0.0
        %297 = vmatpush.msra.mxu0 0.0
        %298 = vmatpush.msra.mxu0 0.0
        %299 = vmatpush.msra.mxu0 %v282
        %300 = vmatpush.msra.mxu0 %v255
        %301 = vmatpush.msra.mxu0 %v253
        %302 = vmatpush.msra.mxu0 %v251
        %303 = vmatmul.f32.gmra.mxu0 %v275
        %v304 = vpop.f32.mrf.mxu0
        %v305 = vadd.f32 %v266, %v304
        %306 = vmatmul.f32.gmra.mxu0 %v278
        %v307 = vpop.f32.mrf.mxu0
        %v308 = vadd.f32 %v271, %v307
        %309 = vdwg.mxu0
        %310 = vmatpush.msra.mxu0 0.0
        %311 = vmatpush.msra.mxu0 0.0
        %312 = vmatpush.msra.mxu0 0.0
        %313 = vmatpush.msra.mxu0 0.0
        %314 = vmatpush.msra.mxu0 0.0
        %315 = vmatpush.msra.mxu0 0.0
        %316 = vmatpush.msra.mxu0 0.0
        %317 = vmatpush.msra.mxu0 0.0
        %318 = vmatpush.msra.mxu0 0.0
        %319 = vmatpush.msra.mxu0 0.0
        %320 = vmatpush.msra.mxu0 0.0
        %321 = vmatpush.msra.mxu0 0.0
        %322 = vmatpush.msra.mxu0 %v285
        %323 = vmatpush.msra.mxu0 %v256
        %324 = vmatpush.msra.mxu0 %v254
        %325 = vmatpush.msra.mxu0 %v252
        %326 = vmatmul.f32.gmra.mxu0 %v275
        %v327 = vpop.f32.mrf.mxu0
        %v328 = vadd.f32 %v266, %v327
        %329 = vmatmul.f32.gmra.mxu0 %v278
        %v330 = vpop.f32.mrf.mxu0
        %v331 = vadd.f32 %v271, %v330
        %332 = vdwg.mxu0
        %vm333 = vcmp.gt.f32.partialorder %v305, 0.0
        %vm334 = vcmp.gt.f32.partialorder %v328, 0.0
        %vm335 = vcmp.gt.f32.partialorder %v308, 0.0
        %vm336 = vcmp.gt.f32.partialorder %v331, 0.0
        %v337 = vstv %s250
        %v338 = vmul.f32 %v337, %v305
        %v339 = vmul.f32 %v337, %v328
        %v340 = vmul.f32 %v337, %v308
        %v341 = vmul.f32 %v337, %v331
        %v342 = vsel %vm333, %v305, %v338
        %v343 = vsel %vm334, %v328, %v339
        %v344 = vsel %vm335, %v308, %v340
        %v345 = vsel %vm336, %v331, %v341
        %v346 = vld [vmem:[%s4] sm:$0x1]
        %v347 = vld [vmem:[%s3] sm:$0xff]
        %v348 = vld [vmem:[%s3 + $0x8] sm:$0xff]
        %v349 = vld [vmem:[%s3 + $0x10] sm:$0xff]
        %v350 = vld [vmem:[%s3 + $0x18] sm:$0xff]
        %v351 = vld [vmem:[%s3 + $0x20] sm:$0xff]
        %v352 = vld [vmem:[%s3 + $0x28] sm:$0xff]
        %v353 = vld [vmem:[%s3 + $0x30] sm:$0xff]
        %v354 = vld [vmem:[%s3 + $0x38] sm:$0xff]
        %v355 = vld [vmem:[%s3 + $0x40] sm:$0xff]
        %v356 = vld [vmem:[%s3 + $0x48] sm:$0xff]
        %v357 = vld [vmem:[%s3 + $0x50] sm:$0xff]
        %v358 = vld [vmem:[%s3 + $0x58] sm:$0xff]
        %v359 = vld [vmem:[%s3 + $0x60] sm:$0xff]
        %v360 = vld [vmem:[%s3 + $0x68] sm:$0xff]
        %v361 = vld [vmem:[%s3 + $0x70] sm:$0xff]
        %v362 = vld [vmem:[%s3 + $0x78] sm:$0xff]
        %v363 = vld [vmem:[%s3 + $0x80] sm:$0xff]
        %v364 = vld [vmem:[%s3 + $0x88] sm:$0xff]
        %v365 = vld [vmem:[%s3 + $0x90] sm:$0xff]
        %v366 = vld [vmem:[%s3 + $0x98] sm:$0xff]
        %v367 = vld [vmem:[%s3 + $0xa0] sm:$0xff]
        %v368 = vld [vmem:[%s3 + $0xa8] sm:$0xff]
        %v369 = vld [vmem:[%s3 + $0xb0] sm:$0xff]
        %v370 = vld [vmem:[%s3 + $0xb8] sm:$0xff]
        %v371 = vld [vmem:[%s3 + $0xc0] sm:$0xff]
        %v372 = vld [vmem:[%s3 + $0xc8] sm:$0xff]
        %v373 = vld [vmem:[%s3 + $0xd0] sm:$0xff]
        %vm374 = vcmask 719872
        %v376 = vsel %vm374, %v343, 0
        %378 = vmatpush.msra.mxu0 %v362
        %379 = vmatpush.msra.mxu0 %v361
        %380 = vmatpush.msra.mxu0 %v360
        %381 = vmatpush.msra.mxu0 %v359
        %382 = vmatpush.msra.mxu0 %v358
        %383 = vmatpush.msra.mxu0 %v357
        %384 = vmatpush.msra.mxu0 %v356
        %385 = vmatpush.msra.mxu0 %v355
        %386 = vmatpush.msra.mxu0 %v354
        %387 = vmatpush.msra.mxu0 %v353
        %388 = vmatpush.msra.mxu0 %v352
        %389 = vmatpush.msra.mxu0 %v351
        %390 = vmatpush.msra.mxu0 %v350
        %391 = vmatpush.msra.mxu0 %v349
        %392 = vmatpush.msra.mxu0 %v348
        %393 = vmatpush.msra.mxu0 %v347
        %394 = vmatmul.f32.gmra.mxu0 %v342
        %v395 = vpop.f32.mrf.mxu0
        %v396 = vadd.f32 0.0, %v395
        %397 = vdwg.mxu0
        %398 = vmatpush.msra.mxu0 0.0
        %399 = vmatpush.msra.mxu0 0.0
        %400 = vmatpush.msra.mxu0 0.0
        %401 = vmatpush.msra.mxu0 0.0
        %402 = vmatpush.msra.mxu0 0.0
        %403 = vmatpush.msra.mxu0 %v373
        %404 = vmatpush.msra.mxu0 %v372
        %405 = vmatpush.msra.mxu0 %v371
        %406 = vmatpush.msra.mxu0 %v370
        %407 = vmatpush.msra.mxu0 %v369
        %408 = vmatpush.msra.mxu0 %v368
        %409 = vmatpush.msra.mxu0 %v367
        %410 = vmatpush.msra.mxu0 %v366
        %411 = vmatpush.msra.mxu0 %v365
        %412 = vmatpush.msra.mxu0 %v364
        %413 = vmatpush.msra.mxu0 %v363
        %414 = vmatmul.f32.gmra.mxu0 %v376
        %v415 = vpop.f32.mrf.mxu0
        %v416 = vadd.f32 %v396, %v415
        %417 = vdwg.mxu0
        %v418 = vadd.f32 %v346, %v416
        %s419 = scalar_lea.vmem %s3, 216
        %v420 = vld [vmem:[%s419] sm:$0xff]
        %v421 = vld [vmem:[%s419 + $0x8] sm:$0xff]
        %v422 = vld [vmem:[%s419 + $0x10] sm:$0xff]
        %v423 = vld [vmem:[%s419 + $0x18] sm:$0xff]
        %v424 = vld [vmem:[%s419 + $0x20] sm:$0xff]
        %v425 = vld [vmem:[%s419 + $0x28] sm:$0xff]
        %v426 = vld [vmem:[%s419 + $0x30] sm:$0xff]
        %v427 = vld [vmem:[%s419 + $0x38] sm:$0xff]
        %v428 = vld [vmem:[%s419 + $0x40] sm:$0xff]
        %v429 = vld [vmem:[%s419 + $0x48] sm:$0xff]
        %v430 = vld [vmem:[%s419 + $0x50] sm:$0xff]
        %v431 = vld [vmem:[%s419 + $0x58] sm:$0xff]
        %v432 = vld [vmem:[%s419 + $0x60] sm:$0xff]
        %v433 = vld [vmem:[%s419 + $0x68] sm:$0xff]
        %v434 = vld [vmem:[%s419 + $0x70] sm:$0xff]
        %v435 = vld [vmem:[%s419 + $0x78] sm:$0xff]
        %v436 = vld [vmem:[%s419 + $0x80] sm:$0xff]
        %v437 = vld [vmem:[%s419 + $0x88] sm:$0xff]
        %v438 = vld [vmem:[%s419 + $0x90] sm:$0xff]
        %v439 = vld [vmem:[%s419 + $0x98] sm:$0xff]
        %v440 = vld [vmem:[%s419 + $0xa0] sm:$0xff]
        %v441 = vld [vmem:[%s419 + $0xa8] sm:$0xff]
        %v442 = vld [vmem:[%s419 + $0xb0] sm:$0xff]
        %v443 = vld [vmem:[%s419 + $0xb8] sm:$0xff]
        %v444 = vld [vmem:[%s419 + $0xc0] sm:$0xff]
        %v445 = vld [vmem:[%s419 + $0xc8] sm:$0xff]
        %v446 = vld [vmem:[%s419 + $0xd0] sm:$0xff]
        %v448 = vrot.slane %v342, 1
        %v449 = vrot.slane %v343, 1
        %v451 = vsel %vm374, %v449, 0
        %453 = vmatpush.msra.mxu0 %v435
        %454 = vmatpush.msra.mxu0 %v434
        %455 = vmatpush.msra.mxu0 %v433
        %456 = vmatpush.msra.mxu0 %v432
        %457 = vmatpush.msra.mxu0 %v431
        %458 = vmatpush.msra.mxu0 %v430
        %459 = vmatpush.msra.mxu0 %v429
        %460 = vmatpush.msra.mxu0 %v428
        %461 = vmatpush.msra.mxu0 %v427
        %462 = vmatpush.msra.mxu0 %v426
        %463 = vmatpush.msra.mxu0 %v425
        %464 = vmatpush.msra.mxu0 %v424
        %465 = vmatpush.msra.mxu0 %v423
        %466 = vmatpush.msra.mxu0 %v422
        %467 = vmatpush.msra.mxu0 %v421
        %468 = vmatpush.msra.mxu0 %v420
        %469 = vmatmul.f32.gmra.mxu0 %v448
        %v470 = vpop.f32.mrf.mxu0
        %v471 = vadd.f32 0.0, %v470
        %472 = vdwg.mxu0
        %473 = vmatpush.msra.mxu0 0.0
        %474 = vmatpush.msra.mxu0 0.0
        %475 = vmatpush.msra.mxu0 0.0
        %476 = vmatpush.msra.mxu0 0.0
        %477 = vmatpush.msra.mxu0 0.0
        %478 = vmatpush.msra.mxu0 %v446
        %479 = vmatpush.msra.mxu0 %v445
        %480 = vmatpush.msra.mxu0 %v444
        %481 = vmatpush.msra.mxu0 %v443
        %482 = vmatpush.msra.mxu0 %v442
        %483 = vmatpush.msra.mxu0 %v441
        %484 = vmatpush.msra.mxu0 %v440
        %485 = vmatpush.msra.mxu0 %v439
        %486 = vmatpush.msra.mxu0 %v438
        %487 = vmatpush.msra.mxu0 %v437
        %488 = vmatpush.msra.mxu0 %v436
        %489 = vmatmul.f32.gmra.mxu0 %v451
        %v490 = vpop.f32.mrf.mxu0
        %v491 = vadd.f32 %v471, %v490
        %492 = vdwg.mxu0
        %v493 = vadd.f32 %v418, %v491
        %s494 = scalar_lea.vmem %s3, 432
        %v495 = vld [vmem:[%s494] sm:$0xff]
        %v496 = vld [vmem:[%s494 + $0x8] sm:$0xff]
        %v497 = vld [vmem:[%s494 + $0x10] sm:$0xff]
        %v498 = vld [vmem:[%s494 + $0x18] sm:$0xff]
        %v499 = vld [vmem:[%s494 + $0x20] sm:$0xff]
        %v500 = vld [vmem:[%s494 + $0x28] sm:$0xff]
        %v501 = vld [vmem:[%s494 + $0x30] sm:$0xff]
        %v502 = vld [vmem:[%s494 + $0x38] sm:$0xff]
        %v503 = vld [vmem:[%s494 + $0x40] sm:$0xff]
        %v504 = vld [vmem:[%s494 + $0x48] sm:$0xff]
        %v505 = vld [vmem:[%s494 + $0x50] sm:$0xff]
        %v506 = vld [vmem:[%s494 + $0x58] sm:$0xff]
        %v507 = vld [vmem:[%s494 + $0x60] sm:$0xff]
        %v508 = vld [vmem:[%s494 + $0x68] sm:$0xff]
        %v509 = vld [vmem:[%s494 + $0x70] sm:$0xff]
        %v510 = vld [vmem:[%s494 + $0x78] sm:$0xff]
        %v511 = vld [vmem:[%s494 + $0x80] sm:$0xff]
        %v512 = vld [vmem:[%s494 + $0x88] sm:$0xff]
        %v513 = vld [vmem:[%s494 + $0x90] sm:$0xff]
        %v514 = vld [vmem:[%s494 + $0x98] sm:$0xff]
        %v515 = vld [vmem:[%s494 + $0xa0] sm:$0xff]
        %v516 = vld [vmem:[%s494 + $0xa8] sm:$0xff]
        %v517 = vld [vmem:[%s494 + $0xb0] sm:$0xff]
        %v518 = vld [vmem:[%s494 + $0xb8] sm:$0xff]
        %v519 = vld [vmem:[%s494 + $0xc0] sm:$0xff]
        %v520 = vld [vmem:[%s494 + $0xc8] sm:$0xff]
        %v521 = vld [vmem:[%s494 + $0xd0] sm:$0xff]
        %v522 = vrot.slane %v342, 2
        %v523 = vrot.slane %v343, 2
        %v525 = vsel %vm374, %v523, 0
        %527 = vmatpush.msra.mxu0 %v510
        %528 = vmatpush.msra.mxu0 %v509
        %529 = vmatpush.msra.mxu0 %v508
        %530 = vmatpush.msra.mxu0 %v507
        %531 = vmatpush.msra.mxu0 %v506
        %532 = vmatpush.msra.mxu0 %v505
        %533 = vmatpush.msra.mxu0 %v504
        %534 = vmatpush.msra.mxu0 %v503
        %535 = vmatpush.msra.mxu0 %v502
        %536 = vmatpush.msra.mxu0 %v501
        %537 = vmatpush.msra.mxu0 %v500
        %538 = vmatpush.msra.mxu0 %v499
        %539 = vmatpush.msra.mxu0 %v498
        %540 = vmatpush.msra.mxu0 %v497
        %541 = vmatpush.msra.mxu0 %v496
        %542 = vmatpush.msra.mxu0 %v495
        %543 = vmatmul.f32.gmra.mxu0 %v522
        %v544 = vpop.f32.mrf.mxu0
        %v545 = vadd.f32 0.0, %v544
        %546 = vdwg.mxu0
        %547 = vmatpush.msra.mxu0 0.0
        %548 = vmatpush.msra.mxu0 0.0
        %549 = vmatpush.msra.mxu0 0.0
        %550 = vmatpush.msra.mxu0 0.0
        %551 = vmatpush.msra.mxu0 0.0
        %552 = vmatpush.msra.mxu0 %v521
        %553 = vmatpush.msra.mxu0 %v520
        %554 = vmatpush.msra.mxu0 %v519
        %555 = vmatpush.msra.mxu0 %v518
        %556 = vmatpush.msra.mxu0 %v517
        %557 = vmatpush.msra.mxu0 %v516
        %558 = vmatpush.msra.mxu0 %v515
        %559 = vmatpush.msra.mxu0 %v514
        %560 = vmatpush.msra.mxu0 %v513
        %561 = vmatpush.msra.mxu0 %v512
        %562 = vmatpush.msra.mxu0 %v511
        %563 = vmatmul.f32.gmra.mxu0 %v525
        %v564 = vpop.f32.mrf.mxu0
        %v565 = vadd.f32 %v545, %v564
        %566 = vdwg.mxu0
        %v567 = vadd.f32 %v493, %v565
        %s568 = scalar_lea.vmem %s3, 648
        %v569 = vld [vmem:[%s568] sm:$0xff]
        %v570 = vld [vmem:[%s568 + $0x8] sm:$0xff]
        %v571 = vld [vmem:[%s568 + $0x10] sm:$0xff]
        %v572 = vld [vmem:[%s568 + $0x18] sm:$0xff]
        %v573 = vld [vmem:[%s568 + $0x20] sm:$0xff]
        %v574 = vld [vmem:[%s568 + $0x28] sm:$0xff]
        %v575 = vld [vmem:[%s568 + $0x30] sm:$0xff]
        %v576 = vld [vmem:[%s568 + $0x38] sm:$0xff]
        %v577 = vld [vmem:[%s568 + $0x40] sm:$0xff]
        %v578 = vld [vmem:[%s568 + $0x48] sm:$0xff]
        %v579 = vld [vmem:[%s568 + $0x50] sm:$0xff]
        %v580 = vld [vmem:[%s568 + $0x58] sm:$0xff]
        %v581 = vld [vmem:[%s568 + $0x60] sm:$0xff]
        %v582 = vld [vmem:[%s568 + $0x68] sm:$0xff]
        %v583 = vld [vmem:[%s568 + $0x70] sm:$0xff]
        %v584 = vld [vmem:[%s568 + $0x78] sm:$0xff]
        %v585 = vld [vmem:[%s568 + $0x80] sm:$0xff]
        %v586 = vld [vmem:[%s568 + $0x88] sm:$0xff]
        %v587 = vld [vmem:[%s568 + $0x90] sm:$0xff]
        %v588 = vld [vmem:[%s568 + $0x98] sm:$0xff]
        %v589 = vld [vmem:[%s568 + $0xa0] sm:$0xff]
        %v590 = vld [vmem:[%s568 + $0xa8] sm:$0xff]
        %v591 = vld [vmem:[%s568 + $0xb0] sm:$0xff]
        %v592 = vld [vmem:[%s568 + $0xb8] sm:$0xff]
        %v593 = vld [vmem:[%s568 + $0xc0] sm:$0xff]
        %v594 = vld [vmem:[%s568 + $0xc8] sm:$0xff]
        %v595 = vld [vmem:[%s568 + $0xd0] sm:$0xff]
        %v596 = vrot.slane %v342, 3
        %v597 = vrot.slane %v343, 3
        %v599 = vsel %vm374, %v597, 0
        %601 = vmatpush.msra.mxu0 %v584
        %602 = vmatpush.msra.mxu0 %v583
        %603 = vmatpush.msra.mxu0 %v582
        %604 = vmatpush.msra.mxu0 %v581
        %605 = vmatpush.msra.mxu0 %v580
        %606 = vmatpush.msra.mxu0 %v579
        %607 = vmatpush.msra.mxu0 %v578
        %608 = vmatpush.msra.mxu0 %v577
        %609 = vmatpush.msra.mxu0 %v576
        %610 = vmatpush.msra.mxu0 %v575
        %611 = vmatpush.msra.mxu0 %v574
        %612 = vmatpush.msra.mxu0 %v573
        %613 = vmatpush.msra.mxu0 %v572
        %614 = vmatpush.msra.mxu0 %v571
        %615 = vmatpush.msra.mxu0 %v570
        %616 = vmatpush.msra.mxu0 %v569
        %617 = vmatmul.f32.gmra.mxu0 %v596
        %v618 = vpop.f32.mrf.mxu0
        %v619 = vadd.f32 0.0, %v618
        %620 = vdwg.mxu0
        %621 = vmatpush.msra.mxu0 0.0
        %622 = vmatpush.msra.mxu0 0.0
        %623 = vmatpush.msra.mxu0 0.0
        %624 = vmatpush.msra.mxu0 0.0
        %625 = vmatpush.msra.mxu0 0.0
        %626 = vmatpush.msra.mxu0 %v595
        %627 = vmatpush.msra.mxu0 %v594
        %628 = vmatpush.msra.mxu0 %v593
        %629 = vmatpush.msra.mxu0 %v592
        %630 = vmatpush.msra.mxu0 %v591
        %631 = vmatpush.msra.mxu0 %v590
        %632 = vmatpush.msra.mxu0 %v589
        %633 = vmatpush.msra.mxu0 %v588
        %634 = vmatpush.msra.mxu0 %v587
        %635 = vmatpush.msra.mxu0 %v586
        %636 = vmatpush.msra.mxu0 %v585
        %637 = vmatmul.f32.gmra.mxu0 %v599
        %v638 = vpop.f32.mrf.mxu0
        %v639 = vadd.f32 %v619, %v638
        %640 = vdwg.mxu0
        %v641 = vadd.f32 %v567, %v639
        %s642 = scalar_lea.vmem %s3, 864
        %v643 = vld [vmem:[%s642] sm:$0xff]
        %v644 = vld [vmem:[%s642 + $0x8] sm:$0xff]
        %v645 = vld [vmem:[%s642 + $0x10] sm:$0xff]
        %v646 = vld [vmem:[%s642 + $0x18] sm:$0xff]
        %v647 = vld [vmem:[%s642 + $0x20] sm:$0xff]
        %v648 = vld [vmem:[%s642 + $0x28] sm:$0xff]
        %v649 = vld [vmem:[%s642 + $0x30] sm:$0xff]
        %v650 = vld [vmem:[%s642 + $0x38] sm:$0xff]
        %v651 = vld [vmem:[%s642 + $0x40] sm:$0xff]
        %v652 = vld [vmem:[%s642 + $0x48] sm:$0xff]
        %v653 = vld [vmem:[%s642 + $0x50] sm:$0xff]
        %v654 = vld [vmem:[%s642 + $0x58] sm:$0xff]
        %v655 = vld [vmem:[%s642 + $0x60] sm:$0xff]
        %v656 = vld [vmem:[%s642 + $0x68] sm:$0xff]
        %v657 = vld [vmem:[%s642 + $0x70] sm:$0xff]
        %v658 = vld [vmem:[%s642 + $0x78] sm:$0xff]
        %v659 = vld [vmem:[%s642 + $0x80] sm:$0xff]
        %v660 = vld [vmem:[%s642 + $0x88] sm:$0xff]
        %v661 = vld [vmem:[%s642 + $0x90] sm:$0xff]
        %v662 = vld [vmem:[%s642 + $0x98] sm:$0xff]
        %v663 = vld [vmem:[%s642 + $0xa0] sm:$0xff]
        %v664 = vld [vmem:[%s642 + $0xa8] sm:$0xff]
        %v665 = vld [vmem:[%s642 + $0xb0] sm:$0xff]
        %v666 = vld [vmem:[%s642 + $0xb8] sm:$0xff]
        %v667 = vld [vmem:[%s642 + $0xc0] sm:$0xff]
        %v668 = vld [vmem:[%s642 + $0xc8] sm:$0xff]
        %v669 = vld [vmem:[%s642 + $0xd0] sm:$0xff]
        %v670 = vrot.slane %v342, 4
        %v671 = vrot.slane %v343, 4
        %v673 = vsel %vm374, %v671, 0
        %675 = vmatpush.msra.mxu0 %v658
        %676 = vmatpush.msra.mxu0 %v657
        %677 = vmatpush.msra.mxu0 %v656
        %678 = vmatpush.msra.mxu0 %v655
        %679 = vmatpush.msra.mxu0 %v654
        %680 = vmatpush.msra.mxu0 %v653
        %681 = vmatpush.msra.mxu0 %v652
        %682 = vmatpush.msra.mxu0 %v651
        %683 = vmatpush.msra.mxu0 %v650
        %684 = vmatpush.msra.mxu0 %v649
        %685 = vmatpush.msra.mxu0 %v648
        %686 = vmatpush.msra.mxu0 %v647
        %687 = vmatpush.msra.mxu0 %v646
        %688 = vmatpush.msra.mxu0 %v645
        %689 = vmatpush.msra.mxu0 %v644
        %690 = vmatpush.msra.mxu0 %v643
        %691 = vmatmul.f32.gmra.mxu0 %v670
        %v692 = vpop.f32.mrf.mxu0
        %v693 = vadd.f32 0.0, %v692
        %694 = vdwg.mxu0
        %695 = vmatpush.msra.mxu0 0.0
        %696 = vmatpush.msra.mxu0 0.0
        %697 = vmatpush.msra.mxu0 0.0
        %698 = vmatpush.msra.mxu0 0.0
        %699 = vmatpush.msra.mxu0 0.0
        %700 = vmatpush.msra.mxu0 %v669
        %701 = vmatpush.msra.mxu0 %v668
        %702 = vmatpush.msra.mxu0 %v667
        %703 = vmatpush.msra.mxu0 %v666
        %704 = vmatpush.msra.mxu0 %v665
        %705 = vmatpush.msra.mxu0 %v664
        %706 = vmatpush.msra.mxu0 %v663
        %707 = vmatpush.msra.mxu0 %v662
        %708 = vmatpush.msra.mxu0 %v661
        %709 = vmatpush.msra.mxu0 %v660
        %710 = vmatpush.msra.mxu0 %v659
        %711 = vmatmul.f32.gmra.mxu0 %v673
        %v712 = vpop.f32.mrf.mxu0
        %v713 = vadd.f32 %v693, %v712
        %714 = vdwg.mxu0
        %v715 = vadd.f32 %v641, %v713
        %s716 = scalar_lea.vmem %s3, 1080
        %v717 = vld [vmem:[%s716] sm:$0xff]
        %v718 = vld [vmem:[%s716 + $0x8] sm:$0xff]
        %v719 = vld [vmem:[%s716 + $0x10] sm:$0xff]
        %v720 = vld [vmem:[%s716 + $0x18] sm:$0xff]
        %v721 = vld [vmem:[%s716 + $0x20] sm:$0xff]
        %v722 = vld [vmem:[%s716 + $0x28] sm:$0xff]
        %v723 = vld [vmem:[%s716 + $0x30] sm:$0xff]
        %v724 = vld [vmem:[%s716 + $0x38] sm:$0xff]
        %v725 = vld [vmem:[%s716 + $0x40] sm:$0xff]
        %v726 = vld [vmem:[%s716 + $0x48] sm:$0xff]
        %v727 = vld [vmem:[%s716 + $0x50] sm:$0xff]
        %v728 = vld [vmem:[%s716 + $0x58] sm:$0xff]
        %v729 = vld [vmem:[%s716 + $0x60] sm:$0xff]
        %v730 = vld [vmem:[%s716 + $0x68] sm:$0xff]
        %v731 = vld [vmem:[%s716 + $0x70] sm:$0xff]
        %v732 = vld [vmem:[%s716 + $0x78] sm:$0xff]
        %v733 = vld [vmem:[%s716 + $0x80] sm:$0xff]
        %v734 = vld [vmem:[%s716 + $0x88] sm:$0xff]
        %v735 = vld [vmem:[%s716 + $0x90] sm:$0xff]
        %v736 = vld [vmem:[%s716 + $0x98] sm:$0xff]
        %v737 = vld [vmem:[%s716 + $0xa0] sm:$0xff]
        %v738 = vld [vmem:[%s716 + $0xa8] sm:$0xff]
        %v739 = vld [vmem:[%s716 + $0xb0] sm:$0xff]
        %v740 = vld [vmem:[%s716 + $0xb8] sm:$0xff]
        %v741 = vld [vmem:[%s716 + $0xc0] sm:$0xff]
        %v742 = vld [vmem:[%s716 + $0xc8] sm:$0xff]
        %v743 = vld [vmem:[%s716 + $0xd0] sm:$0xff]
        %v744 = vrot.slane %v342, 5
        %v745 = vrot.slane %v343, 5
        %v747 = vsel %vm374, %v745, 0
        %749 = vmatpush.msra.mxu0 %v732
        %750 = vmatpush.msra.mxu0 %v731
        %751 = vmatpush.msra.mxu0 %v730
        %752 = vmatpush.msra.mxu0 %v729
        %753 = vmatpush.msra.mxu0 %v728
        %754 = vmatpush.msra.mxu0 %v727
        %755 = vmatpush.msra.mxu0 %v726
        %756 = vmatpush.msra.mxu0 %v725
        %757 = vmatpush.msra.mxu0 %v724
        %758 = vmatpush.msra.mxu0 %v723
        %759 = vmatpush.msra.mxu0 %v722
        %760 = vmatpush.msra.mxu0 %v721
        %761 = vmatpush.msra.mxu0 %v720
        %762 = vmatpush.msra.mxu0 %v719
        %763 = vmatpush.msra.mxu0 %v718
        %764 = vmatpush.msra.mxu0 %v717
        %765 = vmatmul.f32.gmra.mxu0 %v744
        %v766 = vpop.f32.mrf.mxu0
        %v767 = vadd.f32 0.0, %v766
        %768 = vdwg.mxu0
        %769 = vmatpush.msra.mxu0 0.0
        %770 = vmatpush.msra.mxu0 0.0
        %771 = vmatpush.msra.mxu0 0.0
        %772 = vmatpush.msra.mxu0 0.0
        %773 = vmatpush.msra.mxu0 0.0
        %774 = vmatpush.msra.mxu0 %v743
        %775 = vmatpush.msra.mxu0 %v742
        %776 = vmatpush.msra.mxu0 %v741
        %777 = vmatpush.msra.mxu0 %v740
        %778 = vmatpush.msra.mxu0 %v739
        %779 = vmatpush.msra.mxu0 %v738
        %780 = vmatpush.msra.mxu0 %v737
        %781 = vmatpush.msra.mxu0 %v736
        %782 = vmatpush.msra.mxu0 %v735
        %783 = vmatpush.msra.mxu0 %v734
        %784 = vmatpush.msra.mxu0 %v733
        %785 = vmatmul.f32.gmra.mxu0 %v747
        %v786 = vpop.f32.mrf.mxu0
        %v787 = vadd.f32 %v767, %v786
        %788 = vdwg.mxu0
        %v789 = vadd.f32 %v715, %v787
        %s790 = scalar_lea.vmem %s3, 1296
        %v791 = vld [vmem:[%s790] sm:$0xff]
        %v792 = vld [vmem:[%s790 + $0x8] sm:$0xff]
        %v793 = vld [vmem:[%s790 + $0x10] sm:$0xff]
        %v794 = vld [vmem:[%s790 + $0x18] sm:$0xff]
        %v795 = vld [vmem:[%s790 + $0x20] sm:$0xff]
        %v796 = vld [vmem:[%s790 + $0x28] sm:$0xff]
        %v797 = vld [vmem:[%s790 + $0x30] sm:$0xff]
        %v798 = vld [vmem:[%s790 + $0x38] sm:$0xff]
        %v799 = vld [vmem:[%s790 + $0x40] sm:$0xff]
        %v800 = vld [vmem:[%s790 + $0x48] sm:$0xff]
        %v801 = vld [vmem:[%s790 + $0x50] sm:$0xff]
        %v802 = vld [vmem:[%s790 + $0x58] sm:$0xff]
        %v803 = vld [vmem:[%s790 + $0x60] sm:$0xff]
        %v804 = vld [vmem:[%s790 + $0x68] sm:$0xff]
        %v805 = vld [vmem:[%s790 + $0x70] sm:$0xff]
        %v806 = vld [vmem:[%s790 + $0x78] sm:$0xff]
        %v807 = vld [vmem:[%s790 + $0x80] sm:$0xff]
        %v808 = vld [vmem:[%s790 + $0x88] sm:$0xff]
        %v809 = vld [vmem:[%s790 + $0x90] sm:$0xff]
        %v810 = vld [vmem:[%s790 + $0x98] sm:$0xff]
        %v811 = vld [vmem:[%s790 + $0xa0] sm:$0xff]
        %v812 = vld [vmem:[%s790 + $0xa8] sm:$0xff]
        %v813 = vld [vmem:[%s790 + $0xb0] sm:$0xff]
        %v814 = vld [vmem:[%s790 + $0xb8] sm:$0xff]
        %v815 = vld [vmem:[%s790 + $0xc0] sm:$0xff]
        %v816 = vld [vmem:[%s790 + $0xc8] sm:$0xff]
        %v817 = vld [vmem:[%s790 + $0xd0] sm:$0xff]
        %v818 = vrot.slane %v342, 6
        %v819 = vrot.slane %v343, 6
        %v821 = vsel %vm374, %v819, 0
        %823 = vmatpush.msra.mxu0 %v806
        %824 = vmatpush.msra.mxu0 %v805
        %825 = vmatpush.msra.mxu0 %v804
        %826 = vmatpush.msra.mxu0 %v803
        %827 = vmatpush.msra.mxu0 %v802
        %828 = vmatpush.msra.mxu0 %v801
        %829 = vmatpush.msra.mxu0 %v800
        %830 = vmatpush.msra.mxu0 %v799
        %831 = vmatpush.msra.mxu0 %v798
        %832 = vmatpush.msra.mxu0 %v797
        %833 = vmatpush.msra.mxu0 %v796
        %834 = vmatpush.msra.mxu0 %v795
        %835 = vmatpush.msra.mxu0 %v794
        %836 = vmatpush.msra.mxu0 %v793
        %837 = vmatpush.msra.mxu0 %v792
        %838 = vmatpush.msra.mxu0 %v791
        %839 = vmatmul.f32.gmra.mxu0 %v818
        %v840 = vpop.f32.mrf.mxu0
        %v841 = vadd.f32 0.0, %v840
        %842 = vdwg.mxu0
        %843 = vmatpush.msra.mxu0 0.0
        %844 = vmatpush.msra.mxu0 0.0
        %845 = vmatpush.msra.mxu0 0.0
        %846 = vmatpush.msra.mxu0 0.0
        %847 = vmatpush.msra.mxu0 0.0
        %848 = vmatpush.msra.mxu0 %v817
        %849 = vmatpush.msra.mxu0 %v816
        %850 = vmatpush.msra.mxu0 %v815
        %851 = vmatpush.msra.mxu0 %v814
        %852 = vmatpush.msra.mxu0 %v813
        %853 = vmatpush.msra.mxu0 %v812
        %854 = vmatpush.msra.mxu0 %v811
        %855 = vmatpush.msra.mxu0 %v810
        %856 = vmatpush.msra.mxu0 %v809
        %857 = vmatpush.msra.mxu0 %v808
        %858 = vmatpush.msra.mxu0 %v807
        %859 = vmatmul.f32.gmra.mxu0 %v821
        %v860 = vpop.f32.mrf.mxu0
        %v861 = vadd.f32 %v841, %v860
        %862 = vdwg.mxu0
        %v863 = vadd.f32 %v789, %v861
        %s864 = scalar_lea.vmem %s3, 1512
        %v865 = vld [vmem:[%s864] sm:$0xff]
        %v866 = vld [vmem:[%s864 + $0x8] sm:$0xff]
        %v867 = vld [vmem:[%s864 + $0x10] sm:$0xff]
        %v868 = vld [vmem:[%s864 + $0x18] sm:$0xff]
        %v869 = vld [vmem:[%s864 + $0x20] sm:$0xff]
        %v870 = vld [vmem:[%s864 + $0x28] sm:$0xff]
        %v871 = vld [vmem:[%s864 + $0x30] sm:$0xff]
        %v872 = vld [vmem:[%s864 + $0x38] sm:$0xff]
        %v873 = vld [vmem:[%s864 + $0x40] sm:$0xff]
        %v874 = vld [vmem:[%s864 + $0x48] sm:$0xff]
        %v875 = vld [vmem:[%s864 + $0x50] sm:$0xff]
        %v876 = vld [vmem:[%s864 + $0x58] sm:$0xff]
        %v877 = vld [vmem:[%s864 + $0x60] sm:$0xff]
        %v878 = vld [vmem:[%s864 + $0x68] sm:$0xff]
        %v879 = vld [vmem:[%s864 + $0x70] sm:$0xff]
        %v880 = vld [vmem:[%s864 + $0x78] sm:$0xff]
        %v881 = vld [vmem:[%s864 + $0x80] sm:$0xff]
        %v882 = vld [vmem:[%s864 + $0x88] sm:$0xff]
        %v883 = vld [vmem:[%s864 + $0x90] sm:$0xff]
        %v884 = vld [vmem:[%s864 + $0x98] sm:$0xff]
        %v885 = vld [vmem:[%s864 + $0xa0] sm:$0xff]
        %v886 = vld [vmem:[%s864 + $0xa8] sm:$0xff]
        %v887 = vld [vmem:[%s864 + $0xb0] sm:$0xff]
        %v888 = vld [vmem:[%s864 + $0xb8] sm:$0xff]
        %v889 = vld [vmem:[%s864 + $0xc0] sm:$0xff]
        %v890 = vld [vmem:[%s864 + $0xc8] sm:$0xff]
        %v891 = vld [vmem:[%s864 + $0xd0] sm:$0xff]
        %v892 = vrot.slane %v342, 7
        %v893 = vrot.slane %v343, 7
        %v895 = vsel %vm374, %v893, 0
        %897 = vmatpush.msra.mxu0 %v880
        %898 = vmatpush.msra.mxu0 %v879
        %899 = vmatpush.msra.mxu0 %v878
        %900 = vmatpush.msra.mxu0 %v877
        %901 = vmatpush.msra.mxu0 %v876
        %902 = vmatpush.msra.mxu0 %v875
        %903 = vmatpush.msra.mxu0 %v874
        %904 = vmatpush.msra.mxu0 %v873
        %905 = vmatpush.msra.mxu0 %v872
        %906 = vmatpush.msra.mxu0 %v871
        %907 = vmatpush.msra.mxu0 %v870
        %908 = vmatpush.msra.mxu0 %v869
        %909 = vmatpush.msra.mxu0 %v868
        %910 = vmatpush.msra.mxu0 %v867
        %911 = vmatpush.msra.mxu0 %v866
        %912 = vmatpush.msra.mxu0 %v865
        %913 = vmatmul.f32.gmra.mxu0 %v892
        %v914 = vpop.f32.mrf.mxu0
        %v915 = vadd.f32 0.0, %v914
        %916 = vdwg.mxu0
        %917 = vmatpush.msra.mxu0 0.0
        %918 = vmatpush.msra.mxu0 0.0
        %919 = vmatpush.msra.mxu0 0.0
        %920 = vmatpush.msra.mxu0 0.0
        %921 = vmatpush.msra.mxu0 0.0
        %922 = vmatpush.msra.mxu0 %v891
        %923 = vmatpush.msra.mxu0 %v890
        %924 = vmatpush.msra.mxu0 %v889
        %925 = vmatpush.msra.mxu0 %v888
        %926 = vmatpush.msra.mxu0 %v887
        %927 = vmatpush.msra.mxu0 %v886
        %928 = vmatpush.msra.mxu0 %v885
        %929 = vmatpush.msra.mxu0 %v884
        %930 = vmatpush.msra.mxu0 %v883
        %931 = vmatpush.msra.mxu0 %v882
        %932 = vmatpush.msra.mxu0 %v881
        %933 = vmatmul.f32.gmra.mxu0 %v895
        %v934 = vpop.f32.mrf.mxu0
        %v935 = vadd.f32 %v915, %v934
        %936 = vdwg.mxu0
        %v937 = vadd.f32 %v863, %v935
        %s938 = scalar_lea.vmem %s3, 1728
        %v939 = vld [vmem:[%s938] sm:$0xff]
        %v940 = vld [vmem:[%s938 + $0x8] sm:$0xff]
        %v941 = vld [vmem:[%s938 + $0x10] sm:$0xff]
        %v942 = vld [vmem:[%s938 + $0x18] sm:$0xff]
        %v943 = vld [vmem:[%s938 + $0x20] sm:$0xff]
        %v944 = vld [vmem:[%s938 + $0x28] sm:$0xff]
        %v945 = vld [vmem:[%s938 + $0x30] sm:$0xff]
        %v946 = vld [vmem:[%s938 + $0x38] sm:$0xff]
        %v947 = vld [vmem:[%s938 + $0x40] sm:$0xff]
        %v948 = vld [vmem:[%s938 + $0x48] sm:$0xff]
        %v949 = vld [vmem:[%s938 + $0x50] sm:$0xff]
        %v950 = vld [vmem:[%s938 + $0x58] sm:$0xff]
        %v951 = vld [vmem:[%s938 + $0x60] sm:$0xff]
        %v952 = vld [vmem:[%s938 + $0x68] sm:$0xff]
        %v953 = vld [vmem:[%s938 + $0x70] sm:$0xff]
        %v954 = vld [vmem:[%s938 + $0x78] sm:$0xff]
        %v955 = vld [vmem:[%s938 + $0x80] sm:$0xff]
        %v956 = vld [vmem:[%s938 + $0x88] sm:$0xff]
        %v957 = vld [vmem:[%s938 + $0x90] sm:$0xff]
        %v958 = vld [vmem:[%s938 + $0x98] sm:$0xff]
        %v959 = vld [vmem:[%s938 + $0xa0] sm:$0xff]
        %v960 = vld [vmem:[%s938 + $0xa8] sm:$0xff]
        %v961 = vld [vmem:[%s938 + $0xb0] sm:$0xff]
        %v962 = vld [vmem:[%s938 + $0xb8] sm:$0xff]
        %v963 = vld [vmem:[%s938 + $0xc0] sm:$0xff]
        %v964 = vld [vmem:[%s938 + $0xc8] sm:$0xff]
        %v965 = vld [vmem:[%s938 + $0xd0] sm:$0xff]
        %v967 = vsel %vm374, %v345, 0
        %969 = vmatpush.msra.mxu0 %v954
        %970 = vmatpush.msra.mxu0 %v953
        %971 = vmatpush.msra.mxu0 %v952
        %972 = vmatpush.msra.mxu0 %v951
        %973 = vmatpush.msra.mxu0 %v950
        %974 = vmatpush.msra.mxu0 %v949
        %975 = vmatpush.msra.mxu0 %v948
        %976 = vmatpush.msra.mxu0 %v947
        %977 = vmatpush.msra.mxu0 %v946
        %978 = vmatpush.msra.mxu0 %v945
        %979 = vmatpush.msra.mxu0 %v944
        %980 = vmatpush.msra.mxu0 %v943
        %981 = vmatpush.msra.mxu0 %v942
        %982 = vmatpush.msra.mxu0 %v941
        %983 = vmatpush.msra.mxu0 %v940
        %984 = vmatpush.msra.mxu0 %v939
        %985 = vmatmul.f32.gmra.mxu0 %v344
        %v986 = vpop.f32.mrf.mxu0
        %v987 = vadd.f32 0.0, %v986
        %988 = vdwg.mxu0
        %989 = vmatpush.msra.mxu0 0.0
        %990 = vmatpush.msra.mxu0 0.0
        %991 = vmatpush.msra.mxu0 0.0
        %992 = vmatpush.msra.mxu0 0.0
        %993 = vmatpush.msra.mxu0 0.0
        %994 = vmatpush.msra.mxu0 %v965
        %995 = vmatpush.msra.mxu0 %v964
        %996 = vmatpush.msra.mxu0 %v963
        %997 = vmatpush.msra.mxu0 %v962
        %998 = vmatpush.msra.mxu0 %v961
        %999 = vmatpush.msra.mxu0 %v960
        %1000 = vmatpush.msra.mxu0 %v959
        %1001 = vmatpush.msra.mxu0 %v958
        %1002 = vmatpush.msra.mxu0 %v957
        %1003 = vmatpush.msra.mxu0 %v956
        %1004 = vmatpush.msra.mxu0 %v955
        %1005 = vmatmul.f32.gmra.mxu0 %v967
        %v1006 = vpop.f32.mrf.mxu0
        %v1007 = vadd.f32 %v987, %v1006
        %1008 = vdwg.mxu0
        %v1009 = vadd.f32 %v937, %v1007
        %s1010 = scalar_lea.vmem %s3, 1944
        %v1011 = vld [vmem:[%s1010] sm:$0xff]
        %v1012 = vld [vmem:[%s1010 + $0x8] sm:$0xff]
        %v1013 = vld [vmem:[%s1010 + $0x10] sm:$0xff]
        %v1014 = vld [vmem:[%s1010 + $0x18] sm:$0xff]
        %v1015 = vld [vmem:[%s1010 + $0x20] sm:$0xff]
        %v1016 = vld [vmem:[%s1010 + $0x28] sm:$0xff]
        %v1017 = vld [vmem:[%s1010 + $0x30] sm:$0xff]
        %v1018 = vld [vmem:[%s1010 + $0x38] sm:$0xff]
        %v1019 = vld [vmem:[%s1010 + $0x40] sm:$0xff]
        %v1020 = vld [vmem:[%s1010 + $0x48] sm:$0xff]
        %v1021 = vld [vmem:[%s1010 + $0x50] sm:$0xff]
        %v1022 = vld [vmem:[%s1010 + $0x58] sm:$0xff]
        %v1023 = vld [vmem:[%s1010 + $0x60] sm:$0xff]
        %v1024 = vld [vmem:[%s1010 + $0x68] sm:$0xff]
        %v1025 = vld [vmem:[%s1010 + $0x70] sm:$0xff]
        %v1026 = vld [vmem:[%s1010 + $0x78] sm:$0xff]
        %v1027 = vld [vmem:[%s1010 + $0x80] sm:$0xff]
        %v1028 = vld [vmem:[%s1010 + $0x88] sm:$0xff]
        %v1029 = vld [vmem:[%s1010 + $0x90] sm:$0xff]
        %v1030 = vld [vmem:[%s1010 + $0x98] sm:$0xff]
        %v1031 = vld [vmem:[%s1010 + $0xa0] sm:$0xff]
        %v1032 = vld [vmem:[%s1010 + $0xa8] sm:$0xff]
        %v1033 = vld [vmem:[%s1010 + $0xb0] sm:$0xff]
        %v1034 = vld [vmem:[%s1010 + $0xb8] sm:$0xff]
        %v1035 = vld [vmem:[%s1010 + $0xc0] sm:$0xff]
        %v1036 = vld [vmem:[%s1010 + $0xc8] sm:$0xff]
        %v1037 = vld [vmem:[%s1010 + $0xd0] sm:$0xff]
        %v1039 = vrot.slane %v344, 1
        %v1040 = vrot.slane %v345, 1
        %v1042 = vsel %vm374, %v1040, 0
        %1044 = vmatpush.msra.mxu0 %v1026
        %1045 = vmatpush.msra.mxu0 %v1025
        %1046 = vmatpush.msra.mxu0 %v1024
        %1047 = vmatpush.msra.mxu0 %v1023
        %1048 = vmatpush.msra.mxu0 %v1022
        %1049 = vmatpush.msra.mxu0 %v1021
        %1050 = vmatpush.msra.mxu0 %v1020
        %1051 = vmatpush.msra.mxu0 %v1019
        %1052 = vmatpush.msra.mxu0 %v1018
        %1053 = vmatpush.msra.mxu0 %v1017
        %1054 = vmatpush.msra.mxu0 %v1016
        %1055 = vmatpush.msra.mxu0 %v1015
        %1056 = vmatpush.msra.mxu0 %v1014
        %1057 = vmatpush.msra.mxu0 %v1013
        %1058 = vmatpush.msra.mxu0 %v1012
        %1059 = vmatpush.msra.mxu0 %v1011
        %1060 = vmatmul.f32.gmra.mxu0 %v1039
        %v1061 = vpop.f32.mrf.mxu0
        %v1062 = vadd.f32 0.0, %v1061
        %1063 = vdwg.mxu0
        %1064 = vmatpush.msra.mxu0 0.0
        %1065 = vmatpush.msra.mxu0 0.0
        %1066 = vmatpush.msra.mxu0 0.0
        %1067 = vmatpush.msra.mxu0 0.0
        %1068 = vmatpush.msra.mxu0 0.0
        %1069 = vmatpush.msra.mxu0 %v1037
        %1070 = vmatpush.msra.mxu0 %v1036
        %1071 = vmatpush.msra.mxu0 %v1035
        %1072 = vmatpush.msra.mxu0 %v1034
        %1073 = vmatpush.msra.mxu0 %v1033
        %1074 = vmatpush.msra.mxu0 %v1032
        %1075 = vmatpush.msra.mxu0 %v1031
        %1076 = vmatpush.msra.mxu0 %v1030
        %1077 = vmatpush.msra.mxu0 %v1029
        %1078 = vmatpush.msra.mxu0 %v1028
        %1079 = vmatpush.msra.mxu0 %v1027
        %1080 = vmatmul.f32.gmra.mxu0 %v1042
        %v1081 = vpop.f32.mrf.mxu0
        %v1082 = vadd.f32 %v1062, %v1081
        %1083 = vdwg.mxu0
        %v1084 = vadd.f32 %v1009, %v1082
        %s1085 = scalar_lea.vmem %s3, 2160
        %v1086 = vld [vmem:[%s1085] sm:$0xff]
        %v1087 = vld [vmem:[%s1085 + $0x8] sm:$0xff]
        %v1088 = vld [vmem:[%s1085 + $0x10] sm:$0xff]
        %v1089 = vld [vmem:[%s1085 + $0x18] sm:$0xff]
        %v1090 = vld [vmem:[%s1085 + $0x20] sm:$0xff]
        %v1091 = vld [vmem:[%s1085 + $0x28] sm:$0xff]
        %v1092 = vld [vmem:[%s1085 + $0x30] sm:$0xff]
        %v1093 = vld [vmem:[%s1085 + $0x38] sm:$0xff]
        %v1094 = vld [vmem:[%s1085 + $0x40] sm:$0xff]
        %v1095 = vld [vmem:[%s1085 + $0x48] sm:$0xff]
        %v1096 = vld [vmem:[%s1085 + $0x50] sm:$0xff]
        %v1097 = vld [vmem:[%s1085 + $0x58] sm:$0xff]
        %v1098 = vld [vmem:[%s1085 + $0x60] sm:$0xff]
        %v1099 = vld [vmem:[%s1085 + $0x68] sm:$0xff]
        %v1100 = vld [vmem:[%s1085 + $0x70] sm:$0xff]
        %v1101 = vld [vmem:[%s1085 + $0x78] sm:$0xff]
        %v1102 = vld [vmem:[%s1085 + $0x80] sm:$0xff]
        %v1103 = vld [vmem:[%s1085 + $0x88] sm:$0xff]
        %v1104 = vld [vmem:[%s1085 + $0x90] sm:$0xff]
        %v1105 = vld [vmem:[%s1085 + $0x98] sm:$0xff]
        %v1106 = vld [vmem:[%s1085 + $0xa0] sm:$0xff]
        %v1107 = vld [vmem:[%s1085 + $0xa8] sm:$0xff]
        %v1108 = vld [vmem:[%s1085 + $0xb0] sm:$0xff]
        %v1109 = vld [vmem:[%s1085 + $0xb8] sm:$0xff]
        %v1110 = vld [vmem:[%s1085 + $0xc0] sm:$0xff]
        %v1111 = vld [vmem:[%s1085 + $0xc8] sm:$0xff]
        %v1112 = vld [vmem:[%s1085 + $0xd0] sm:$0xff]
        %v1113 = vrot.slane %v344, 2
        %v1114 = vrot.slane %v345, 2
        %v1116 = vsel %vm374, %v1114, 0
        %1118 = vmatpush.msra.mxu0 %v1101
        %1119 = vmatpush.msra.mxu0 %v1100
        %1120 = vmatpush.msra.mxu0 %v1099
        %1121 = vmatpush.msra.mxu0 %v1098
        %1122 = vmatpush.msra.mxu0 %v1097
        %1123 = vmatpush.msra.mxu0 %v1096
        %1124 = vmatpush.msra.mxu0 %v1095
        %1125 = vmatpush.msra.mxu0 %v1094
        %1126 = vmatpush.msra.mxu0 %v1093
        %1127 = vmatpush.msra.mxu0 %v1092
        %1128 = vmatpush.msra.mxu0 %v1091
        %1129 = vmatpush.msra.mxu0 %v1090
        %1130 = vmatpush.msra.mxu0 %v1089
        %1131 = vmatpush.msra.mxu0 %v1088
        %1132 = vmatpush.msra.mxu0 %v1087
        %1133 = vmatpush.msra.mxu0 %v1086
        %1134 = vmatmul.f32.gmra.mxu0 %v1113
        %v1135 = vpop.f32.mrf.mxu0
        %v1136 = vadd.f32 0.0, %v1135
        %1137 = vdwg.mxu0
        %1138 = vmatpush.msra.mxu0 0.0
        %1139 = vmatpush.msra.mxu0 0.0
        %1140 = vmatpush.msra.mxu0 0.0
        %1141 = vmatpush.msra.mxu0 0.0
        %1142 = vmatpush.msra.mxu0 0.0
        %1143 = vmatpush.msra.mxu0 %v1112
        %1144 = vmatpush.msra.mxu0 %v1111
        %1145 = vmatpush.msra.mxu0 %v1110
        %1146 = vmatpush.msra.mxu0 %v1109
        %1147 = vmatpush.msra.mxu0 %v1108
        %1148 = vmatpush.msra.mxu0 %v1107
        %1149 = vmatpush.msra.mxu0 %v1106
        %1150 = vmatpush.msra.mxu0 %v1105
        %1151 = vmatpush.msra.mxu0 %v1104
        %1152 = vmatpush.msra.mxu0 %v1103
        %1153 = vmatpush.msra.mxu0 %v1102
        %1154 = vmatmul.f32.gmra.mxu0 %v1116
        %v1155 = vpop.f32.mrf.mxu0
        %v1156 = vadd.f32 %v1136, %v1155
        %1157 = vdwg.mxu0
        %v1158 = vadd.f32 %v1084, %v1156
        %s1159 = scalar_lea.vmem %s3, 2376
        %v1160 = vld [vmem:[%s1159] sm:$0xff]
        %v1161 = vld [vmem:[%s1159 + $0x8] sm:$0xff]
        %v1162 = vld [vmem:[%s1159 + $0x10] sm:$0xff]
        %v1163 = vld [vmem:[%s1159 + $0x18] sm:$0xff]
        %v1164 = vld [vmem:[%s1159 + $0x20] sm:$0xff]
        %v1165 = vld [vmem:[%s1159 + $0x28] sm:$0xff]
        %v1166 = vld [vmem:[%s1159 + $0x30] sm:$0xff]
        %v1167 = vld [vmem:[%s1159 + $0x38] sm:$0xff]
        %v1168 = vld [vmem:[%s1159 + $0x40] sm:$0xff]
        %v1169 = vld [vmem:[%s1159 + $0x48] sm:$0xff]
        %v1170 = vld [vmem:[%s1159 + $0x50] sm:$0xff]
        %v1171 = vld [vmem:[%s1159 + $0x58] sm:$0xff]
        %v1172 = vld [vmem:[%s1159 + $0x60] sm:$0xff]
        %v1173 = vld [vmem:[%s1159 + $0x68] sm:$0xff]
        %v1174 = vld [vmem:[%s1159 + $0x70] sm:$0xff]
        %v1175 = vld [vmem:[%s1159 + $0x78] sm:$0xff]
        %v1176 = vld [vmem:[%s1159 + $0x80] sm:$0xff]
        %v1177 = vld [vmem:[%s1159 + $0x88] sm:$0xff]
        %v1178 = vld [vmem:[%s1159 + $0x90] sm:$0xff]
        %v1179 = vld [vmem:[%s1159 + $0x98] sm:$0xff]
        %v1180 = vld [vmem:[%s1159 + $0xa0] sm:$0xff]
        %v1181 = vld [vmem:[%s1159 + $0xa8] sm:$0xff]
        %v1182 = vld [vmem:[%s1159 + $0xb0] sm:$0xff]
        %v1183 = vld [vmem:[%s1159 + $0xb8] sm:$0xff]
        %v1184 = vld [vmem:[%s1159 + $0xc0] sm:$0xff]
        %v1185 = vld [vmem:[%s1159 + $0xc8] sm:$0xff]
        %v1186 = vld [vmem:[%s1159 + $0xd0] sm:$0xff]
        %v1187 = vrot.slane %v344, 3
        %v1188 = vrot.slane %v345, 3
        %v1190 = vsel %vm374, %v1188, 0
        %1192 = vmatpush.msra.mxu0 %v1175
        %1193 = vmatpush.msra.mxu0 %v1174
        %1194 = vmatpush.msra.mxu0 %v1173
        %1195 = vmatpush.msra.mxu0 %v1172
        %1196 = vmatpush.msra.mxu0 %v1171
        %1197 = vmatpush.msra.mxu0 %v1170
        %1198 = vmatpush.msra.mxu0 %v1169
        %1199 = vmatpush.msra.mxu0 %v1168
        %1200 = vmatpush.msra.mxu0 %v1167
        %1201 = vmatpush.msra.mxu0 %v1166
        %1202 = vmatpush.msra.mxu0 %v1165
        %1203 = vmatpush.msra.mxu0 %v1164
        %1204 = vmatpush.msra.mxu0 %v1163
        %1205 = vmatpush.msra.mxu0 %v1162
        %1206 = vmatpush.msra.mxu0 %v1161
        %1207 = vmatpush.msra.mxu0 %v1160
        %1208 = vmatmul.f32.gmra.mxu0 %v1187
        %v1209 = vpop.f32.mrf.mxu0
        %v1210 = vadd.f32 0.0, %v1209
        %1211 = vdwg.mxu0
        %1212 = vmatpush.msra.mxu0 0.0
        %1213 = vmatpush.msra.mxu0 0.0
        %1214 = vmatpush.msra.mxu0 0.0
        %1215 = vmatpush.msra.mxu0 0.0
        %1216 = vmatpush.msra.mxu0 0.0
        %1217 = vmatpush.msra.mxu0 %v1186
        %1218 = vmatpush.msra.mxu0 %v1185
        %1219 = vmatpush.msra.mxu0 %v1184
        %1220 = vmatpush.msra.mxu0 %v1183
        %1221 = vmatpush.msra.mxu0 %v1182
        %1222 = vmatpush.msra.mxu0 %v1181
        %1223 = vmatpush.msra.mxu0 %v1180
        %1224 = vmatpush.msra.mxu0 %v1179
        %1225 = vmatpush.msra.mxu0 %v1178
        %1226 = vmatpush.msra.mxu0 %v1177
        %1227 = vmatpush.msra.mxu0 %v1176
        %1228 = vmatmul.f32.gmra.mxu0 %v1190
        %v1229 = vpop.f32.mrf.mxu0
        %v1230 = vadd.f32 %v1210, %v1229
        %1231 = vdwg.mxu0
        %v1232 = vadd.f32 %v1158, %v1230
        %s1233 = scalar_lea.vmem %s3, 2592
        %v1234 = vld [vmem:[%s1233] sm:$0xff]
        %v1235 = vld [vmem:[%s1233 + $0x8] sm:$0xff]
        %v1236 = vld [vmem:[%s1233 + $0x10] sm:$0xff]
        %v1237 = vld [vmem:[%s1233 + $0x18] sm:$0xff]
        %v1238 = vld [vmem:[%s1233 + $0x20] sm:$0xff]
        %v1239 = vld [vmem:[%s1233 + $0x28] sm:$0xff]
        %v1240 = vld [vmem:[%s1233 + $0x30] sm:$0xff]
        %v1241 = vld [vmem:[%s1233 + $0x38] sm:$0xff]
        %v1242 = vld [vmem:[%s1233 + $0x40] sm:$0xff]
        %v1243 = vld [vmem:[%s1233 + $0x48] sm:$0xff]
        %v1244 = vld [vmem:[%s1233 + $0x50] sm:$0xff]
        %v1245 = vld [vmem:[%s1233 + $0x58] sm:$0xff]
        %v1246 = vld [vmem:[%s1233 + $0x60] sm:$0xff]
        %v1247 = vld [vmem:[%s1233 + $0x68] sm:$0xff]
        %v1248 = vld [vmem:[%s1233 + $0x70] sm:$0xff]
        %v1249 = vld [vmem:[%s1233 + $0x78] sm:$0xff]
        %v1250 = vld [vmem:[%s1233 + $0x80] sm:$0xff]
        %v1251 = vld [vmem:[%s1233 + $0x88] sm:$0xff]
        %v1252 = vld [vmem:[%s1233 + $0x90] sm:$0xff]
        %v1253 = vld [vmem:[%s1233 + $0x98] sm:$0xff]
        %v1254 = vld [vmem:[%s1233 + $0xa0] sm:$0xff]
        %v1255 = vld [vmem:[%s1233 + $0xa8] sm:$0xff]
        %v1256 = vld [vmem:[%s1233 + $0xb0] sm:$0xff]
        %v1257 = vld [vmem:[%s1233 + $0xb8] sm:$0xff]
        %v1258 = vld [vmem:[%s1233 + $0xc0] sm:$0xff]
        %v1259 = vld [vmem:[%s1233 + $0xc8] sm:$0xff]
        %v1260 = vld [vmem:[%s1233 + $0xd0] sm:$0xff]
        %v1261 = vrot.slane %v344, 4
        %v1262 = vrot.slane %v345, 4
        %v1264 = vsel %vm374, %v1262, 0
        %1266 = vmatpush.msra.mxu0 %v1249
        %1267 = vmatpush.msra.mxu0 %v1248
        %1268 = vmatpush.msra.mxu0 %v1247
        %1269 = vmatpush.msra.mxu0 %v1246
        %1270 = vmatpush.msra.mxu0 %v1245
        %1271 = vmatpush.msra.mxu0 %v1244
        %1272 = vmatpush.msra.mxu0 %v1243
        %1273 = vmatpush.msra.mxu0 %v1242
        %1274 = vmatpush.msra.mxu0 %v1241
        %1275 = vmatpush.msra.mxu0 %v1240
        %1276 = vmatpush.msra.mxu0 %v1239
        %1277 = vmatpush.msra.mxu0 %v1238
        %1278 = vmatpush.msra.mxu0 %v1237
        %1279 = vmatpush.msra.mxu0 %v1236
        %1280 = vmatpush.msra.mxu0 %v1235
        %1281 = vmatpush.msra.mxu0 %v1234
        %1282 = vmatmul.f32.gmra.mxu0 %v1261
        %v1283 = vpop.f32.mrf.mxu0
        %v1284 = vadd.f32 0.0, %v1283
        %1285 = vdwg.mxu0
        %1286 = vmatpush.msra.mxu0 0.0
        %1287 = vmatpush.msra.mxu0 0.0
        %1288 = vmatpush.msra.mxu0 0.0
        %1289 = vmatpush.msra.mxu0 0.0
        %1290 = vmatpush.msra.mxu0 0.0
        %1291 = vmatpush.msra.mxu0 %v1260
        %1292 = vmatpush.msra.mxu0 %v1259
        %1293 = vmatpush.msra.mxu0 %v1258
        %1294 = vmatpush.msra.mxu0 %v1257
        %1295 = vmatpush.msra.mxu0 %v1256
        %1296 = vmatpush.msra.mxu0 %v1255
        %1297 = vmatpush.msra.mxu0 %v1254
        %1298 = vmatpush.msra.mxu0 %v1253
        %1299 = vmatpush.msra.mxu0 %v1252
        %1300 = vmatpush.msra.mxu0 %v1251
        %1301 = vmatpush.msra.mxu0 %v1250
        %1302 = vmatmul.f32.gmra.mxu0 %v1264
        %v1303 = vpop.f32.mrf.mxu0
        %v1304 = vadd.f32 %v1284, %v1303
        %1305 = vdwg.mxu0
        %v1306 = vadd.f32 %v1232, %v1304
        %s1307 = scalar_lea.vmem %s3, 2808
        %v1308 = vld [vmem:[%s1307] sm:$0xff]
        %v1309 = vld [vmem:[%s1307 + $0x8] sm:$0xff]
        %v1310 = vld [vmem:[%s1307 + $0x10] sm:$0xff]
        %v1311 = vld [vmem:[%s1307 + $0x18] sm:$0xff]
        %v1312 = vld [vmem:[%s1307 + $0x20] sm:$0xff]
        %v1313 = vld [vmem:[%s1307 + $0x28] sm:$0xff]
        %v1314 = vld [vmem:[%s1307 + $0x30] sm:$0xff]
        %v1315 = vld [vmem:[%s1307 + $0x38] sm:$0xff]
        %v1316 = vld [vmem:[%s1307 + $0x40] sm:$0xff]
        %v1317 = vld [vmem:[%s1307 + $0x48] sm:$0xff]
        %v1318 = vld [vmem:[%s1307 + $0x50] sm:$0xff]
        %v1319 = vld [vmem:[%s1307 + $0x58] sm:$0xff]
        %v1320 = vld [vmem:[%s1307 + $0x60] sm:$0xff]
        %v1321 = vld [vmem:[%s1307 + $0x68] sm:$0xff]
        %v1322 = vld [vmem:[%s1307 + $0x70] sm:$0xff]
        %v1323 = vld [vmem:[%s1307 + $0x78] sm:$0xff]
        %v1324 = vld [vmem:[%s1307 + $0x80] sm:$0xff]
        %v1325 = vld [vmem:[%s1307 + $0x88] sm:$0xff]
        %v1326 = vld [vmem:[%s1307 + $0x90] sm:$0xff]
        %v1327 = vld [vmem:[%s1307 + $0x98] sm:$0xff]
        %v1328 = vld [vmem:[%s1307 + $0xa0] sm:$0xff]
        %v1329 = vld [vmem:[%s1307 + $0xa8] sm:$0xff]
        %v1330 = vld [vmem:[%s1307 + $0xb0] sm:$0xff]
        %v1331 = vld [vmem:[%s1307 + $0xb8] sm:$0xff]
        %v1332 = vld [vmem:[%s1307 + $0xc0] sm:$0xff]
        %v1333 = vld [vmem:[%s1307 + $0xc8] sm:$0xff]
        %v1334 = vld [vmem:[%s1307 + $0xd0] sm:$0xff]
        %v1335 = vrot.slane %v344, 5
        %v1336 = vrot.slane %v345, 5
        %v1338 = vsel %vm374, %v1336, 0
        %1340 = vmatpush.msra.mxu0 %v1323
        %1341 = vmatpush.msra.mxu0 %v1322
        %1342 = vmatpush.msra.mxu0 %v1321
        %1343 = vmatpush.msra.mxu0 %v1320
        %1344 = vmatpush.msra.mxu0 %v1319
        %1345 = vmatpush.msra.mxu0 %v1318
        %1346 = vmatpush.msra.mxu0 %v1317
        %1347 = vmatpush.msra.mxu0 %v1316
        %1348 = vmatpush.msra.mxu0 %v1315
        %1349 = vmatpush.msra.mxu0 %v1314
        %1350 = vmatpush.msra.mxu0 %v1313
        %1351 = vmatpush.msra.mxu0 %v1312
        %1352 = vmatpush.msra.mxu0 %v1311
        %1353 = vmatpush.msra.mxu0 %v1310
        %1354 = vmatpush.msra.mxu0 %v1309
        %1355 = vmatpush.msra.mxu0 %v1308
        %1356 = vmatmul.f32.gmra.mxu0 %v1335
        %v1357 = vpop.f32.mrf.mxu0
        %v1358 = vadd.f32 0.0, %v1357
        %1359 = vdwg.mxu0
        %1360 = vmatpush.msra.mxu0 0.0
        %1361 = vmatpush.msra.mxu0 0.0
        %1362 = vmatpush.msra.mxu0 0.0
        %1363 = vmatpush.msra.mxu0 0.0
        %1364 = vmatpush.msra.mxu0 0.0
        %1365 = vmatpush.msra.mxu0 %v1334
        %1366 = vmatpush.msra.mxu0 %v1333
        %1367 = vmatpush.msra.mxu0 %v1332
        %1368 = vmatpush.msra.mxu0 %v1331
        %1369 = vmatpush.msra.mxu0 %v1330
        %1370 = vmatpush.msra.mxu0 %v1329
        %1371 = vmatpush.msra.mxu0 %v1328
        %1372 = vmatpush.msra.mxu0 %v1327
        %1373 = vmatpush.msra.mxu0 %v1326
        %1374 = vmatpush.msra.mxu0 %v1325
        %1375 = vmatpush.msra.mxu0 %v1324
        %1376 = vmatmul.f32.gmra.mxu0 %v1338
        %v1377 = vpop.f32.mrf.mxu0
        %v1378 = vadd.f32 %v1358, %v1377
        %1379 = vdwg.mxu0
        %v1380 = vadd.f32 %v1306, %v1378
        %s1381 = scalar_lea.vmem %s3, 3024
        %v1382 = vld [vmem:[%s1381] sm:$0xff]
        %v1383 = vld [vmem:[%s1381 + $0x8] sm:$0xff]
        %v1384 = vld [vmem:[%s1381 + $0x10] sm:$0xff]
        %v1385 = vld [vmem:[%s1381 + $0x18] sm:$0xff]
        %v1386 = vld [vmem:[%s1381 + $0x20] sm:$0xff]
        %v1387 = vld [vmem:[%s1381 + $0x28] sm:$0xff]
        %v1388 = vld [vmem:[%s1381 + $0x30] sm:$0xff]
        %v1389 = vld [vmem:[%s1381 + $0x38] sm:$0xff]
        %v1390 = vld [vmem:[%s1381 + $0x40] sm:$0xff]
        %v1391 = vld [vmem:[%s1381 + $0x48] sm:$0xff]
        %v1392 = vld [vmem:[%s1381 + $0x50] sm:$0xff]
        %v1393 = vld [vmem:[%s1381 + $0x58] sm:$0xff]
        %v1394 = vld [vmem:[%s1381 + $0x60] sm:$0xff]
        %v1395 = vld [vmem:[%s1381 + $0x68] sm:$0xff]
        %v1396 = vld [vmem:[%s1381 + $0x70] sm:$0xff]
        %v1397 = vld [vmem:[%s1381 + $0x78] sm:$0xff]
        %v1398 = vld [vmem:[%s1381 + $0x80] sm:$0xff]
        %v1399 = vld [vmem:[%s1381 + $0x88] sm:$0xff]
        %v1400 = vld [vmem:[%s1381 + $0x90] sm:$0xff]
        %v1401 = vld [vmem:[%s1381 + $0x98] sm:$0xff]
        %v1402 = vld [vmem:[%s1381 + $0xa0] sm:$0xff]
        %v1403 = vld [vmem:[%s1381 + $0xa8] sm:$0xff]
        %v1404 = vld [vmem:[%s1381 + $0xb0] sm:$0xff]
        %v1405 = vld [vmem:[%s1381 + $0xb8] sm:$0xff]
        %v1406 = vld [vmem:[%s1381 + $0xc0] sm:$0xff]
        %v1407 = vld [vmem:[%s1381 + $0xc8] sm:$0xff]
        %v1408 = vld [vmem:[%s1381 + $0xd0] sm:$0xff]
        %v1409 = vrot.slane %v344, 6
        %v1410 = vrot.slane %v345, 6
        %v1412 = vsel %vm374, %v1410, 0
        %1414 = vmatpush.msra.mxu0 %v1397
        %1415 = vmatpush.msra.mxu0 %v1396
        %1416 = vmatpush.msra.mxu0 %v1395
        %1417 = vmatpush.msra.mxu0 %v1394
        %1418 = vmatpush.msra.mxu0 %v1393
        %1419 = vmatpush.msra.mxu0 %v1392
        %1420 = vmatpush.msra.mxu0 %v1391
        %1421 = vmatpush.msra.mxu0 %v1390
        %1422 = vmatpush.msra.mxu0 %v1389
        %1423 = vmatpush.msra.mxu0 %v1388
        %1424 = vmatpush.msra.mxu0 %v1387
        %1425 = vmatpush.msra.mxu0 %v1386
        %1426 = vmatpush.msra.mxu0 %v1385
        %1427 = vmatpush.msra.mxu0 %v1384
        %1428 = vmatpush.msra.mxu0 %v1383
        %1429 = vmatpush.msra.mxu0 %v1382
        %1430 = vmatmul.f32.gmra.mxu0 %v1409
        %v1431 = vpop.f32.mrf.mxu0
        %v1432 = vadd.f32 0.0, %v1431
        %1433 = vdwg.mxu0
        %1434 = vmatpush.msra.mxu0 0.0
        %1435 = vmatpush.msra.mxu0 0.0
        %1436 = vmatpush.msra.mxu0 0.0
        %1437 = vmatpush.msra.mxu0 0.0
        %1438 = vmatpush.msra.mxu0 0.0
        %1439 = vmatpush.msra.mxu0 %v1408
        %1440 = vmatpush.msra.mxu0 %v1407
        %1441 = vmatpush.msra.mxu0 %v1406
        %1442 = vmatpush.msra.mxu0 %v1405
        %1443 = vmatpush.msra.mxu0 %v1404
        %1444 = vmatpush.msra.mxu0 %v1403
        %1445 = vmatpush.msra.mxu0 %v1402
        %1446 = vmatpush.msra.mxu0 %v1401
        %1447 = vmatpush.msra.mxu0 %v1400
        %1448 = vmatpush.msra.mxu0 %v1399
        %1449 = vmatpush.msra.mxu0 %v1398
        %1450 = vmatmul.f32.gmra.mxu0 %v1412
        %v1451 = vpop.f32.mrf.mxu0
        %v1452 = vadd.f32 %v1432, %v1451
        %1453 = vdwg.mxu0
        %v1454 = vadd.f32 %v1380, %v1452
        %s1455 = scalar_lea.vmem %s3, 3240
        %v1456 = vld [vmem:[%s1455] sm:$0xff]
        %v1457 = vld [vmem:[%s1455 + $0x8] sm:$0xff]
        %v1458 = vld [vmem:[%s1455 + $0x10] sm:$0xff]
        %v1459 = vld [vmem:[%s1455 + $0x18] sm:$0xff]
        %v1460 = vld [vmem:[%s1455 + $0x20] sm:$0xff]
        %v1461 = vld [vmem:[%s1455 + $0x28] sm:$0xff]
        %v1462 = vld [vmem:[%s1455 + $0x30] sm:$0xff]
        %v1463 = vld [vmem:[%s1455 + $0x38] sm:$0xff]
        %v1464 = vld [vmem:[%s1455 + $0x40] sm:$0xff]
        %v1465 = vld [vmem:[%s1455 + $0x48] sm:$0xff]
        %v1466 = vld [vmem:[%s1455 + $0x50] sm:$0xff]
        %v1467 = vld [vmem:[%s1455 + $0x58] sm:$0xff]
        %v1468 = vld [vmem:[%s1455 + $0x60] sm:$0xff]
        %v1469 = vld [vmem:[%s1455 + $0x68] sm:$0xff]
        %v1470 = vld [vmem:[%s1455 + $0x70] sm:$0xff]
        %v1471 = vld [vmem:[%s1455 + $0x78] sm:$0xff]
        %v1472 = vld [vmem:[%s1455 + $0x80] sm:$0xff]
        %v1473 = vld [vmem:[%s1455 + $0x88] sm:$0xff]
        %v1474 = vld [vmem:[%s1455 + $0x90] sm:$0xff]
        %v1475 = vld [vmem:[%s1455 + $0x98] sm:$0xff]
        %v1476 = vld [vmem:[%s1455 + $0xa0] sm:$0xff]
        %v1477 = vld [vmem:[%s1455 + $0xa8] sm:$0xff]
        %v1478 = vld [vmem:[%s1455 + $0xb0] sm:$0xff]
        %v1479 = vld [vmem:[%s1455 + $0xb8] sm:$0xff]
        %v1480 = vld [vmem:[%s1455 + $0xc0] sm:$0xff]
        %v1481 = vld [vmem:[%s1455 + $0xc8] sm:$0xff]
        %v1482 = vld [vmem:[%s1455 + $0xd0] sm:$0xff]
        %v1483 = vrot.slane %v344, 7
        %v1484 = vrot.slane %v345, 7
        %v1486 = vsel %vm374, %v1484, 0
        %1488 = vmatpush.msra.mxu0 %v1471
        %1489 = vmatpush.msra.mxu0 %v1470
        %1490 = vmatpush.msra.mxu0 %v1469
        %1491 = vmatpush.msra.mxu0 %v1468
        %1492 = vmatpush.msra.mxu0 %v1467
        %1493 = vmatpush.msra.mxu0 %v1466
        %1494 = vmatpush.msra.mxu0 %v1465
        %1495 = vmatpush.msra.mxu0 %v1464
        %1496 = vmatpush.msra.mxu0 %v1463
        %1497 = vmatpush.msra.mxu0 %v1462
        %1498 = vmatpush.msra.mxu0 %v1461
        %1499 = vmatpush.msra.mxu0 %v1460
        %1500 = vmatpush.msra.mxu0 %v1459
        %1501 = vmatpush.msra.mxu0 %v1458
        %1502 = vmatpush.msra.mxu0 %v1457
        %1503 = vmatpush.msra.mxu0 %v1456
        %1504 = vmatmul.f32.gmra.mxu0 %v1483
        %v1505 = vpop.f32.mrf.mxu0
        %v1506 = vadd.f32 0.0, %v1505
        %1507 = vdwg.mxu0
        %1508 = vmatpush.msra.mxu0 0.0
        %1509 = vmatpush.msra.mxu0 0.0
        %1510 = vmatpush.msra.mxu0 0.0
        %1511 = vmatpush.msra.mxu0 0.0
        %1512 = vmatpush.msra.mxu0 0.0
        %1513 = vmatpush.msra.mxu0 %v1482
        %1514 = vmatpush.msra.mxu0 %v1481
        %1515 = vmatpush.msra.mxu0 %v1480
        %1516 = vmatpush.msra.mxu0 %v1479
        %1517 = vmatpush.msra.mxu0 %v1478
        %1518 = vmatpush.msra.mxu0 %v1477
        %1519 = vmatpush.msra.mxu0 %v1476
        %1520 = vmatpush.msra.mxu0 %v1475
        %1521 = vmatpush.msra.mxu0 %v1474
        %1522 = vmatpush.msra.mxu0 %v1473
        %1523 = vmatpush.msra.mxu0 %v1472
        %1524 = vmatmul.f32.gmra.mxu0 %v1486
        %v1525 = vpop.f32.mrf.mxu0
        %v1526 = vadd.f32 %v1506, %v1525
        %1527 = vdwg.mxu0
        %v1528 = vadd.f32 %v1454, %v1526
        %vm1529 = vcmask 253952
        %1530 = vst.msk [vmem:[%s244] sm:$0x1] %vm1529, %v1528
        %s1531 = sand.u32 %s160, 1
        %s1532 = scalar_lea.sflag [#allocation4], %s1531
        %s1533 = sand.u32 %s160, 1
        %s1534 = scalar_lea.vmem [#allocation3], %s1533
        // Predicated region
        $region45: #{voxel_encoder4_forward.1} parent=43 // pred_check
          %p1535 = pneg %p170
        $region46: #{voxel_encoder4_forward.1} parent=43 // pred_check_branch
          %1537 = sbr.rel (%p1535) target = $region48
        $region47: #{voxel_encoder4_forward.1} parent=43 // pred_region
          %1539 = vsyncadd %s1532, 0
          %s1540 = scalar_lea.hbm %s6, %s21
          %s1542 = sshll.u32 %s1534, 4
          %s1543 = int_to_ptr.vmem [resolvable:$true] %s1542
          %s1544 = sshll.u32 %s1540, 4
          %s1545 = int_to_ptr.hbm [resolvable:$true] %s1544
          %1547 = dma.vmem_to_hbm [thread:$0]  %s1543, 16, %s1545, %s1532
        $region48: #{voxel_encoder4_forward.1} parent=43 // pred_fallthru
          _
      $region44: #{voxel_encoder4_forward.1} parent=5 // pred_fallthru
        _
      %p1548 = scmp.le.s32.totalorder 2, %s16
      // Predicated region
      $region49: #{voxel_encoder4_forward.1} parent=5 // pred_check
        %p1549 = pneg %p1548
      $region50: #{voxel_encoder4_forward.1} parent=5 // pred_check_branch
        %1551 = sbr.rel (%p1549) target = $region52
      $region51: #{voxel_encoder4_forward.1} parent=5 // pred_region
        %s1552 = ssub.s32 %s16, 2
        // Predicated region
        $region53: #{voxel_encoder4_forward.1} parent=51 // pred_check
          %p1553 = pneg %p176
        $region54: #{voxel_encoder4_forward.1} parent=51 // pred_check_branch
          %1555 = sbr.rel (%p1553) target = $region56
        $region55: #{voxel_encoder4_forward.1} parent=51 // pred_region
          %s1556 = sand.u32 %s161, 1
          %s1557 = scalar_lea.sflag [#allocation4], %s1556
          %s1558 = sand.u32 %s161, 1
          %s1559 = scalar_lea.vmem [#allocation3], %s1558
          %1561 = dma.done %s1557, 16
        $region56: #{voxel_encoder4_forward.1} parent=51 // pred_fallthru
          _
      $region52: #{voxel_encoder4_forward.1} parent=5 // pred_fallthru
        _
    $region6: #{voxel_encoder4_forward.1} parent=1 // loop_footer
      %s20 = sadd.s32 1, %s16
    $region7: #{voxel_encoder4_forward.1} parent=1 // loop_footer_branch
      %15 = sbr.rel target = $region3
    $region8: #{voxel_encoder4_forward.1} parent=1 // loop_exit
      _
    %1562 = vsyncpa [#allocation4], 1
    %s1563 = scalar_lea.sflag [#allocation4], 1
    %1564 = vsyncpa %s1563, 1

</llo_original>
